<compile_context>
chip_gen: v7x
topology: tpu7x:2x2x1
jax: 0.10.0
libtpu: 0.0.40
codegen_flags: <defaults>
</compile_context>

<pallas_src>
import jax
import jax.numpy as jnp
from jax.experimental import pallas as pl
from jax.experimental.pallas import tpu as pltpu

# ---- module hyper-parameters (hidden=768 is hard-coded in the PyTorch forward) ----
HIDDEN = 768                          # config.hidden_size
D_SIZE = 32                           # args.d_size
N_FILTERS = 8                         # args.cnn_size  (TextCNN n_filters)
FILTER_SIZE = 2                       # args.filter_size -> filter_sizes = [1, 2]
FILTER_SIZES = tuple(range(1, FILTER_SIZE + 1))
BATCH = 2
SEQ = (FILTER_SIZE * HIDDEN) // HIDDEN   # reshape(B, -1, 768) -> seq len 2

# number of (filter_size, position) column blocks in the fused first-stage weight
_N_TAP_BLOCKS = sum(SEQ - fs + 1 for fs in FILTER_SIZES)        # 3
_BIG_COLS = _N_TAP_BLOCKS * N_FILTERS + D_SIZE                  # 56
_CAT_COLS = len(FILTER_SIZES) * N_FILTERS + D_SIZE              # 48


def _cnnfuse_kernel(features_ref, wbig_ref, *rest):
    nfs = len(FILTER_SIZES)
    conv_b = rest[0:nfs]                          # each (1, N_FILTERS), f32
    blin_ref, w2_ref, bout_ref, out_ref = rest[nfs:]

    # --- Stage 1: ONE MXU pass over the shared K=1536 input covers every conv
    # tap and self.linear.  z column layout: [per-(fs,pos) tap blocks | wlin].
    z = jnp.dot(features_ref[...], wbig_ref[...],
                preferred_element_type=jnp.float32)             # (B, 56) f32

    # Max-pool over positions on raw conv scores, then bias + ReLU once.
    col = 0
    pooled = []
    for i, fs in enumerate(FILTER_SIZES):
        n_pos = SEQ - fs + 1
        m = z[:, col:col + N_FILTERS]
        col += N_FILTERS
        for _ in range(1, n_pos):
            m = jnp.maximum(m, z[:, col:col + N_FILTERS])
            col += N_FILTERS
        pooled.append(jnp.maximum(m + conv_b[i][...], 0.0))     # (B, N_FILTERS)
    feat = z[:, col:col + D_SIZE] + blin_ref[...]               # (B, D_SIZE)

    # --- Stage 2: dense layer with TextCNN.fc pre-folded in.  Split-weight
    # matmuls over static 8-aligned sublane slices of w2; output is the
    # lane-dense 768-wide block.
    acc = bout_ref[...]                                         # (1, 768) broadcasts
    for i, p in enumerate(pooled):
        wblk = w2_ref[i * N_FILTERS:(i + 1) * N_FILTERS, :]
        acc = acc + jnp.dot(p.astype(w2_ref.dtype), wblk,
                            preferred_element_type=jnp.float32)
    acc = acc + jnp.dot(feat.astype(w2_ref.dtype),
                        w2_ref[nfs * N_FILTERS:, :],
                        preferred_element_type=jnp.float32)
    # TODO(synk): dropout(0.2) inside TextCNN and the outer hidden dropout are
    # eval-mode identities here (no RNG masking).
    out_ref[...] = acc.astype(out_ref.dtype)


def pack_params(params, dtype=jnp.bfloat16):
    """Offline fold / pre-pack of the module weights for the fused kernel."""
    # First-stage combined weight: one column block per (filter_size, position)
    # conv tap, plus the wlin block, all sharing the K=1536 contraction.
    cols = []
    for fs in FILTER_SIZES:
        w = params[f"conv_w{fs}"]                       # (fs, HIDDEN, N_FILTERS)
        for t in range(SEQ - fs + 1):
            blk = jnp.zeros((SEQ, HIDDEN, N_FILTERS), jnp.float32)
            blk = blk.at[t:t + fs].set(w)
            cols.append(blk.reshape(SEQ * HIDDEN, N_FILTERS))
    cols.append(params["wlin"])                         # (SEQ*HIDDEN, D_SIZE)
    wbig = jnp.concatenate(cols, axis=1)                # (1536, 56)

    # Second stage: TextCNN.fc folded into dense (wlin path kept separate).
    wfold = params["wfc"] @ params["wd"][:D_SIZE, :]    # (len(fs)*nf, 768)
    w2 = jnp.concatenate([wfold, params["wd"][D_SIZE:, :]], axis=0)   # (48, 768)
    bout = params["bd"] + params["bfc"] @ params["wd"][:D_SIZE, :]    # (1, 768)

    packed = {
        "wbig": wbig.astype(dtype),
        "w2": w2.astype(dtype),
        "bout": bout.astype(jnp.float32),
        "blin": params["blin"].astype(jnp.float32),
    }
    for fs in FILTER_SIZES:
        packed[f"conv_b{fs}"] = params[f"conv_b{fs}"].astype(jnp.float32)
    return packed


def cnnfuse_forward(features, packed):
    inputs = [features.astype(packed["wbig"].dtype), packed["wbig"]]
    inputs += [packed[f"conv_b{fs}"] for fs in FILTER_SIZES]
    inputs += [packed["blin"], packed["w2"], packed["bout"]]

    in_specs = [pl.BlockSpec(memory_space=pltpu.MemorySpace.VMEM) for _ in inputs]
    out_spec = pl.BlockSpec(memory_space=pltpu.MemorySpace.VMEM)

    flops = 2 * BATCH * (SEQ * HIDDEN) * _BIG_COLS + 2 * BATCH * _CAT_COLS * HIDDEN
    bytes_accessed = sum(int(x.size) * x.dtype.itemsize for x in inputs) \
        + BATCH * HIDDEN * 4

    return pl.pallas_call(
        _cnnfuse_kernel,
        out_shape=jax.ShapeDtypeStruct((BATCH, HIDDEN), jnp.float32),
        in_specs=in_specs,
        out_specs=out_spec,
        cost_estimate=pl.CostEstimate(
            flops=flops, transcendentals=0, bytes_accessed=bytes_accessed),
    )(*inputs)


def make_params(key):
    """Deterministic synthetic parameters with the module's shapes (f32)."""
    params = {}
    keys = jax.random.split(key, 4 + len(FILTER_SIZES))
    for i, fs in enumerate(FILTER_SIZES):
        # PyTorch Conv1d weight is (out, in, fs); stored as (fs, in, out) here
        fan = HIDDEN * fs + N_FILTERS
        scale = jnp.sqrt(6.0 / fan)                              # xavier_uniform-ish
        params[f"conv_w{fs}"] = jax.random.uniform(
            keys[i], (fs, HIDDEN, N_FILTERS), jnp.float32, -scale, scale)
        params[f"conv_b{fs}"] = jnp.full((1, N_FILTERS), 0.1, jnp.float32)
    # TextCNN.fc : Linear(len(fs)*n_filters, d_size)
    params["wfc"] = jax.random.normal(
        keys[-4], (len(FILTER_SIZES) * N_FILTERS, D_SIZE), jnp.float32) * 0.1
    params["bfc"] = jnp.zeros((1, D_SIZE), jnp.float32)
    # self.linear : Linear(filter_size*hidden, d_size)
    params["wlin"] = jax.random.normal(
        keys[-3], (FILTER_SIZE * HIDDEN, D_SIZE), jnp.float32) * 0.02
    params["blin"] = jnp.zeros((1, D_SIZE), jnp.float32)
    # self.dense : Linear(2*d_size, hidden)
    params["wd"] = jax.random.normal(
        keys[-2], (2 * D_SIZE, HIDDEN), jnp.float32) * 0.02
    params["bd"] = jax.random.normal(keys[-1], (1, HIDDEN), jnp.float32) * 0.01
    return params


def ref_forward(features, params):
    """Pure-JAX f32 reference of the original (unfused) forward."""
    x = features.reshape(BATCH, SEQ, HIDDEN)
    pooled = []
    for fs in FILTER_SIZES:
        w, b = params[f"conv_w{fs}"], params[f"conv_b{fs}"]
        outs = []
        for t in range(SEQ - fs + 1):
            acc = b
            for k in range(fs):
                acc = acc + x[:, t + k, :] @ w[k]
            outs.append(jnp.maximum(acc, 0.0))
        pooled.append(jnp.max(jnp.stack(outs, 0), axis=0))
    cat = jnp.concatenate(pooled, axis=-1)
    outputs = cat @ params["wfc"] + params["bfc"]
    feat = features @ params["wlin"] + params["blin"]
    xc = jnp.concatenate([outputs, feat], axis=-1)
    return xc @ params["wd"] + params["bd"]


if __name__ == "__main__":
    key = jax.random.PRNGKey(0)
    k_feat, k_par = jax.random.split(key)
    features = jax.random.normal(
        k_feat, (BATCH, FILTER_SIZE * HIDDEN), jnp.float32)      # (2, 1536)
    params = make_params(k_par)
    packed = pack_params(params)

    out = cnnfuse_forward(features, packed)
    out = jax.block_until_ready(out)

    ref = ref_forward(features, params)
    assert out.shape == (BATCH, HIDDEN), out.shape
    # bf16 inputs with f32 accumulation -> looser tolerance than pure-f32 path
    max_err = float(jnp.max(jnp.abs(out - ref)))
    assert jnp.allclose(out, ref, atol=2e-2, rtol=2e-2), max_err
    print("KERNEL_OK")
</pallas_src>

<mosaic_0001>
module attributes {stable_mosaic.version = 11 : i64} {
  func.func @_cnnfuse_kernel(%arg0: memref<2x1536xbf16, #tpu.memory_space<vmem>>, %arg1: memref<1536x56xbf16, #tpu.memory_space<vmem>>, %arg2: memref<1x8xf32, #tpu.memory_space<vmem>>, %arg3: memref<1x8xf32, #tpu.memory_space<vmem>>, %arg4: memref<1x32xf32, #tpu.memory_space<vmem>>, %arg5: memref<48x768xbf16, #tpu.memory_space<vmem>>, %arg6: memref<1x768xf32, #tpu.memory_space<vmem>>, %arg7: memref<2x768xf32, #tpu.memory_space<vmem>>) attributes {dimension_semantics = [], scalar_prefetch = 0 : i64, scratch_operands = 0 : i64, tpu.core_type = #tpu.core_type<tc>} {
    %c0 = arith.constant 0 : index
    %c0_0 = arith.constant 0 : index
    %0 = vector.load %arg0[%c0, %c0_0] : memref<2x1536xbf16, #tpu.memory_space<vmem>>, vector<2x1536xbf16>
    %c0_1 = arith.constant 0 : index
    %c0_2 = arith.constant 0 : index
    %1 = vector.load %arg1[%c0_1, %c0_2] : memref<1536x56xbf16, #tpu.memory_space<vmem>>, vector<1536x56xbf16>
    %cst = arith.constant dense<0.000000e+00> : vector<2x56xf32>
    %2 = tpu.matmul %0, %1, %cst {dimension_numbers = #tpu.dot_dimension_numbers<[1], [0], [0], [1], [0, 0, 1, 1], [], []>} : vector<2x1536xbf16>, vector<1536x56xbf16>, vector<2x56xf32> -> vector<2x56xf32>
    %3 = vector.extract_strided_slice %2 {offsets = [0, 0], sizes = [2, 8], strides = [1, 1]} : vector<2x56xf32> to vector<2x8xf32>
    %4 = vector.extract_strided_slice %2 {offsets = [0, 8], sizes = [2, 8], strides = [1, 1]} : vector<2x56xf32> to vector<2x8xf32>
    %5 = arith.maximumf %3, %4 : vector<2x8xf32>
    %c0_3 = arith.constant 0 : index
    %c0_4 = arith.constant 0 : index
    %6 = vector.load %arg2[%c0_3, %c0_4] : memref<1x8xf32, #tpu.memory_space<vmem>>, vector<1x8xf32>
    %7 = vector.broadcast %6 : vector<1x8xf32> to vector<2x8xf32>
    %8 = arith.addf %5, %7 : vector<2x8xf32>
    %cst_5 = arith.constant 0.000000e+00 : f32
    %9 = vector.broadcast %cst_5 : f32 to vector<2x8xf32>
    %10 = arith.maximumf %8, %9 : vector<2x8xf32>
    %11 = vector.extract_strided_slice %2 {offsets = [0, 16], sizes = [2, 8], strides = [1, 1]} : vector<2x56xf32> to vector<2x8xf32>
    %c0_6 = arith.constant 0 : index
    %c0_7 = arith.constant 0 : index
    %12 = vector.load %arg3[%c0_6, %c0_7] : memref<1x8xf32, #tpu.memory_space<vmem>>, vector<1x8xf32>
    %13 = vector.broadcast %12 : vector<1x8xf32> to vector<2x8xf32>
    %14 = arith.addf %11, %13 : vector<2x8xf32>
    %cst_8 = arith.constant 0.000000e+00 : f32
    %15 = vector.broadcast %cst_8 : f32 to vector<2x8xf32>
    %16 = arith.maximumf %14, %15 : vector<2x8xf32>
    %17 = vector.extract_strided_slice %2 {offsets = [0, 24], sizes = [2, 32], strides = [1, 1]} : vector<2x56xf32> to vector<2x32xf32>
    %c0_9 = arith.constant 0 : index
    %c0_10 = arith.constant 0 : index
    %18 = vector.load %arg4[%c0_9, %c0_10] : memref<1x32xf32, #tpu.memory_space<vmem>>, vector<1x32xf32>
    %19 = vector.broadcast %18 : vector<1x32xf32> to vector<2x32xf32>
    %20 = arith.addf %17, %19 : vector<2x32xf32>
    %c0_11 = arith.constant 0 : index
    %c0_12 = arith.constant 0 : index
    %21 = vector.load %arg6[%c0_11, %c0_12] : memref<1x768xf32, #tpu.memory_space<vmem>>, vector<1x768xf32>
    %c0_13 = arith.constant 0 : index
    %c0_14 = arith.constant 0 : index
    %22 = vector.load %arg5[%c0_13, %c0_14] : memref<48x768xbf16, #tpu.memory_space<vmem>>, vector<8x768xbf16>
    %23 = arith.truncf %10 : vector<2x8xf32> to vector<2x8xbf16>
    %cst_15 = arith.constant dense<0.000000e+00> : vector<2x768xf32>
    %24 = tpu.matmul %23, %22, %cst_15 {dimension_numbers = #tpu.dot_dimension_numbers<[1], [0], [0], [1], [0, 0, 1, 1], [], []>} : vector<2x8xbf16>, vector<8x768xbf16>, vector<2x768xf32> -> vector<2x768xf32>
    %25 = vector.broadcast %21 : vector<1x768xf32> to vector<2x768xf32>
    %26 = arith.addf %25, %24 : vector<2x768xf32>
    %c8 = arith.constant 8 : index
    %c0_16 = arith.constant 0 : index
    %27 = vector.load %arg5[%c8, %c0_16] : memref<48x768xbf16, #tpu.memory_space<vmem>>, vector<8x768xbf16>
    %28 = arith.truncf %16 : vector<2x8xf32> to vector<2x8xbf16>
    %cst_17 = arith.constant dense<0.000000e+00> : vector<2x768xf32>
    %29 = tpu.matmul %28, %27, %cst_17 {dimension_numbers = #tpu.dot_dimension_numbers<[1], [0], [0], [1], [0, 0, 1, 1], [], []>} : vector<2x8xbf16>, vector<8x768xbf16>, vector<2x768xf32> -> vector<2x768xf32>
    %30 = arith.addf %26, %29 : vector<2x768xf32>
    %31 = arith.truncf %20 : vector<2x32xf32> to vector<2x32xbf16>
    %c16 = arith.constant 16 : index
    %c0_18 = arith.constant 0 : index
    %32 = vector.load %arg5[%c16, %c0_18] : memref<48x768xbf16, #tpu.memory_space<vmem>>, vector<32x768xbf16>
    %cst_19 = arith.constant dense<0.000000e+00> : vector<2x768xf32>
    %33 = tpu.matmul %31, %32, %cst_19 {dimension_numbers = #tpu.dot_dimension_numbers<[1], [0], [0], [1], [0, 0, 1, 1], [], []>} : vector<2x32xbf16>, vector<32x768xbf16>, vector<2x768xf32> -> vector<2x768xf32>
    %34 = arith.addf %30, %33 : vector<2x768xf32>
    %c0_20 = arith.constant 0 : index
    %c0_21 = arith.constant 0 : index
    %35 = vector.load %arg7[%c0_20, %c0_21] : memref<2x768xf32, #tpu.memory_space<vmem>>, vector<2x768xf32>
    tpu.vector_store %arg7[%c0_20, %c0_21], %34 {strides = array<i32>} : memref<2x768xf32, #tpu.memory_space<vmem>>, vector<2x768xf32>,
    return
  }
}

</mosaic_0001>

<llo_original>
// kernel: tpu_custom_call.1
$region0: #{tpu_custom_call.1}
  #allocation0 [shape = 'u32[]', space=smem, size = 0x4, offset = 0x4, fixed_abs, tag = 'smem constant byte address 0x4 - core index']
  #allocation1 [shape = 'u32[144,128]{1,0:T(1,128)}', space=vmem, size = 0x12000, scoped, tag = 'internal scratch']
  %s0 = inlined_call_operand.vmem [shape: bf16[2,1536], index: 0, kind: input, shape index: {}]
  %s1 = inlined_call_operand.vmem [shape: bf16[1536,56], index: 1, kind: input, shape index: {}]
  %s2 = inlined_call_operand.vmem [shape: f32[1,8], index: 2, kind: input, shape index: {}]
  %s3 = inlined_call_operand.vmem [shape: f32[1,8], index: 3, kind: input, shape index: {}]
  %s4 = inlined_call_operand.vmem [shape: f32[1,32], index: 4, kind: input, shape index: {}]
  %s5 = inlined_call_operand.vmem [shape: bf16[48,768], index: 5, kind: input, shape index: {}]
  %s6 = inlined_call_operand.vmem [shape: f32[1,768], index: 6, kind: input, shape index: {}]
  %s7 = inlined_call_operand.hbm [shape: f32[2,768], index: 7, kind: output, shape index: {}]
  %s8 = sld [smem:[#allocation0]]
  $region38: #{tpu_custom_call.1} parent=0
    _
  %s10 = ssub.s32 1, %s8
  %s11 = scalar_select 0, %s10, %s8
  $region1: #{tpu_custom_call.1} parent=0
    #allocation2 [shape = 'u8[6144]{0}', space=vmem, size = 0x1800, scoped, tag = 'output window, operand 0, single buffered']
    #allocation3 [shape = 's32[1]{0}', space=sflag, size = 0x4, scoped, tag = 'scoped memory for tpu_custom_call.1']
    %12 = vsyncpa [#allocation3], 0
    // Predicated region
    $region2: #{tpu_custom_call.1} parent=1 // pred_check
      _
    $region3: #{tpu_custom_call.1} parent=1 // pred_check_branch
      %14 = sbr.rel (0) target = $region5
    $region4: #{tpu_custom_call.1} parent=1 // pred_region
      _
    $region5: #{tpu_custom_call.1} parent=1 // pred_fallthru
      _
    // Predicated region
    $region6: #{tpu_custom_call.1} parent=1 // pred_check
      _
    $region7: #{tpu_custom_call.1} parent=1 // pred_check_branch
      %16 = sbr.rel (0) target = $region9
    $region8: #{tpu_custom_call.1} parent=1 // pred_region
      _
    $region9: #{tpu_custom_call.1} parent=1 // pred_fallthru
      _
    // Predicated region
    $region10: #{tpu_custom_call.1} parent=1 // pred_check
      _
    $region11: #{tpu_custom_call.1} parent=1 // pred_check_branch
      %18 = sbr.rel (0) target = $region13
    $region12: #{tpu_custom_call.1} parent=1 // pred_region
      _
    $region13: #{tpu_custom_call.1} parent=1 // pred_fallthru
      _
    // Predicated region
    $region14: #{tpu_custom_call.1} parent=1 // pred_check
      _
    $region15: #{tpu_custom_call.1} parent=1 // pred_check_branch
      %20 = sbr.rel (0) target = $region17
    $region16: #{tpu_custom_call.1} parent=1 // pred_region
      _
    $region17: #{tpu_custom_call.1} parent=1 // pred_fallthru
      _
    // Predicated region
    $region18: #{tpu_custom_call.1} parent=1 // pred_check
      _
    $region19: #{tpu_custom_call.1} parent=1 // pred_check_branch
      %22 = sbr.rel (0) target = $region21
    $region20: #{tpu_custom_call.1} parent=1 // pred_region
      _
    $region21: #{tpu_custom_call.1} parent=1 // pred_fallthru
      _
    // Predicated region
    $region22: #{tpu_custom_call.1} parent=1 // pred_check
      _
    $region23: #{tpu_custom_call.1} parent=1 // pred_check_branch
      %24 = sbr.rel (0) target = $region25
    $region24: #{tpu_custom_call.1} parent=1 // pred_region
      _
    $region25: #{tpu_custom_call.1} parent=1 // pred_fallthru
      _
    // Predicated region
    $region26: #{tpu_custom_call.1} parent=1 // pred_check
      _
    $region27: #{tpu_custom_call.1} parent=1 // pred_check_branch
      %26 = sbr.rel (0) target = $region29
    $region28: #{tpu_custom_call.1} parent=1 // pred_region
      _
    $region29: #{tpu_custom_call.1} parent=1 // pred_fallthru
      _
    %v28 = vld [vmem:[%s0] sm:$0xff]
    %v29 = vld [vmem:[%s0 + $0x8] sm:$0xf]
    %v30 = vld [vmem:[%s1] sm:$0xf]
    %v31 = vld [vmem:[%s1 + $0x4] sm:$0xf]
    %v32 = vld [vmem:[%s1 + $0x8] sm:$0xf]
    %v33 = vld [vmem:[%s1 + $0xc] sm:$0xf]
    %v34 = vld [vmem:[%s1 + $0x10] sm:$0xf]
    %v35 = vld [vmem:[%s1 + $0x14] sm:$0xf]
    %v36 = vld [vmem:[%s1 + $0x18] sm:$0xf]
    %v37 = vld [vmem:[%s1 + $0x1c] sm:$0xf]
    %v38 = vld [vmem:[%s1 + $0x20] sm:$0xf]
    %v39 = vld [vmem:[%s1 + $0x24] sm:$0xf]
    %v40 = vld [vmem:[%s1 + $0x28] sm:$0xf]
    %v41 = vld [vmem:[%s1 + $0x2c] sm:$0xf]
    %v42 = vld [vmem:[%s1 + $0x30] sm:$0xf]
    %v43 = vld [vmem:[%s1 + $0x34] sm:$0xf]
    %v44 = vld [vmem:[%s1 + $0x38] sm:$0xf]
    %v45 = vld [vmem:[%s1 + $0x3c] sm:$0xf]
    %v46 = vld [vmem:[%s1 + $0x40] sm:$0xf]
    %v47 = vld [vmem:[%s1 + $0x44] sm:$0xf]
    %v48 = vld [vmem:[%s1 + $0x48] sm:$0xf]
    %v49 = vld [vmem:[%s1 + $0x4c] sm:$0xf]
    %v50 = vld [vmem:[%s1 + $0x50] sm:$0xf]
    %v51 = vld [vmem:[%s1 + $0x54] sm:$0xf]
    %v52 = vld [vmem:[%s1 + $0x58] sm:$0xf]
    %v53 = vld [vmem:[%s1 + $0x5c] sm:$0xf]
    %v54 = vld [vmem:[%s1 + $0x60] sm:$0xf]
    %v55 = vld [vmem:[%s1 + $0x64] sm:$0xf]
    %v56 = vld [vmem:[%s1 + $0x68] sm:$0xf]
    %v57 = vld [vmem:[%s1 + $0x6c] sm:$0xf]
    %v58 = vld [vmem:[%s1 + $0x70] sm:$0xf]
    %v59 = vld [vmem:[%s1 + $0x74] sm:$0xf]
    %v60 = vld [vmem:[%s1 + $0x78] sm:$0xf]
    %v61 = vld [vmem:[%s1 + $0x7c] sm:$0xf]
    %v62 = vld [vmem:[%s1 + $0x80] sm:$0xf]
    %v63 = vld [vmem:[%s1 + $0x84] sm:$0xf]
    %v64 = vld [vmem:[%s1 + $0x88] sm:$0xf]
    %v65 = vld [vmem:[%s1 + $0x8c] sm:$0xf]
    %v66 = vld [vmem:[%s1 + $0x90] sm:$0xf]
    %v67 = vld [vmem:[%s1 + $0x94] sm:$0xf]
    %v68 = vld [vmem:[%s1 + $0x98] sm:$0xf]
    %v69 = vld [vmem:[%s1 + $0x9c] sm:$0xf]
    %v70 = vld [vmem:[%s1 + $0xa0] sm:$0xf]
    %v71 = vld [vmem:[%s1 + $0xa4] sm:$0xf]
    %v72 = vld [vmem:[%s1 + $0xa8] sm:$0xf]
    %v73 = vld [vmem:[%s1 + $0xac] sm:$0xf]
    %v74 = vld [vmem:[%s1 + $0xb0] sm:$0xf]
    %v75 = vld [vmem:[%s1 + $0xb4] sm:$0xf]
    %v76 = vld [vmem:[%s1 + $0xb8] sm:$0xf]
    %v77 = vld [vmem:[%s1 + $0xbc] sm:$0xf]
    %v78 = vld [vmem:[%s1 + $0xc0] sm:$0xf]
    %v79 = vld [vmem:[%s1 + $0xc4] sm:$0xf]
    %v80 = vld [vmem:[%s1 + $0xc8] sm:$0xf]
    %v81 = vld [vmem:[%s1 + $0xcc] sm:$0xf]
    %v82 = vld [vmem:[%s1 + $0xd0] sm:$0xf]
    %v83 = vld [vmem:[%s1 + $0xd4] sm:$0xf]
    %v84 = vld [vmem:[%s1 + $0xd8] sm:$0xf]
    %v85 = vld [vmem:[%s1 + $0xdc] sm:$0xf]
    %v86 = vld [vmem:[%s1 + $0xe0] sm:$0xf]
    %v87 = vld [vmem:[%s1 + $0xe4] sm:$0xf]
    %v88 = vld [vmem:[%s1 + $0xe8] sm:$0xf]
    %v89 = vld [vmem:[%s1 + $0xec] sm:$0xf]
    %v90 = vld [vmem:[%s1 + $0xf0] sm:$0xf]
    %v91 = vld [vmem:[%s1 + $0xf4] sm:$0xf]
    %v92 = vld [vmem:[%s1 + $0xf8] sm:$0xf]
    %v93 = vld [vmem:[%s1 + $0xfc] sm:$0xf]
    %v94 = vld [vmem:[%s1 + $0x100] sm:$0xf]
    %v95 = vld [vmem:[%s1 + $0x104] sm:$0xf]
    %v96 = vld [vmem:[%s1 + $0x108] sm:$0xf]
    %v97 = vld [vmem:[%s1 + $0x10c] sm:$0xf]
    %v98 = vld [vmem:[%s1 + $0x110] sm:$0xf]
    %v99 = vld [vmem:[%s1 + $0x114] sm:$0xf]
    %v100 = vld [vmem:[%s1 + $0x118] sm:$0xf]
    %v101 = vld [vmem:[%s1 + $0x11c] sm:$0xf]
    %v102 = vld [vmem:[%s1 + $0x120] sm:$0xf]
    %v103 = vld [vmem:[%s1 + $0x124] sm:$0xf]
    %v104 = vld [vmem:[%s1 + $0x128] sm:$0xf]
    %v105 = vld [vmem:[%s1 + $0x12c] sm:$0xf]
    %v106 = vld [vmem:[%s1 + $0x130] sm:$0xf]
    %v107 = vld [vmem:[%s1 + $0x134] sm:$0xf]
    %v108 = vld [vmem:[%s1 + $0x138] sm:$0xf]
    %v109 = vld [vmem:[%s1 + $0x13c] sm:$0xf]
    %v110 = vld [vmem:[%s1 + $0x140] sm:$0xf]
    %v111 = vld [vmem:[%s1 + $0x144] sm:$0xf]
    %v112 = vld [vmem:[%s1 + $0x148] sm:$0xf]
    %v113 = vld [vmem:[%s1 + $0x14c] sm:$0xf]
    %v114 = vld [vmem:[%s1 + $0x150] sm:$0xf]
    %v115 = vld [vmem:[%s1 + $0x154] sm:$0xf]
    %v116 = vld [vmem:[%s1 + $0x158] sm:$0xf]
    %v117 = vld [vmem:[%s1 + $0x15c] sm:$0xf]
    %v118 = vld [vmem:[%s1 + $0x160] sm:$0xf]
    %v119 = vld [vmem:[%s1 + $0x164] sm:$0xf]
    %v120 = vld [vmem:[%s1 + $0x168] sm:$0xf]
    %v121 = vld [vmem:[%s1 + $0x16c] sm:$0xf]
    %v122 = vld [vmem:[%s1 + $0x170] sm:$0xf]
    %v123 = vld [vmem:[%s1 + $0x174] sm:$0xf]
    %v124 = vld [vmem:[%s1 + $0x178] sm:$0xf]
    %v125 = vld [vmem:[%s1 + $0x17c] sm:$0xf]
    %v126 = vld [vmem:[%s1 + $0x180] sm:$0xf]
    %v127 = vld [vmem:[%s1 + $0x184] sm:$0xf]
    %v128 = vld [vmem:[%s1 + $0x188] sm:$0xf]
    %v129 = vld [vmem:[%s1 + $0x18c] sm:$0xf]
    %v130 = vld [vmem:[%s1 + $0x190] sm:$0xf]
    %v131 = vld [vmem:[%s1 + $0x194] sm:$0xf]
    %v132 = vld [vmem:[%s1 + $0x198] sm:$0xf]
    %v133 = vld [vmem:[%s1 + $0x19c] sm:$0xf]
    %v134 = vld [vmem:[%s1 + $0x1a0] sm:$0xf]
    %v135 = vld [vmem:[%s1 + $0x1a4] sm:$0xf]
    %v136 = vld [vmem:[%s1 + $0x1a8] sm:$0xf]
    %v137 = vld [vmem:[%s1 + $0x1ac] sm:$0xf]
    %v138 = vld [vmem:[%s1 + $0x1b0] sm:$0xf]
    %v139 = vld [vmem:[%s1 + $0x1b4] sm:$0xf]
    %v140 = vld [vmem:[%s1 + $0x1b8] sm:$0xf]
    %v141 = vld [vmem:[%s1 + $0x1bc] sm:$0xf]
    %v142 = vld [vmem:[%s1 + $0x1c0] sm:$0xf]
    %v143 = vld [vmem:[%s1 + $0x1c4] sm:$0xf]
    %v144 = vld [vmem:[%s1 + $0x1c8] sm:$0xf]
    %v145 = vld [vmem:[%s1 + $0x1cc] sm:$0xf]
    %v146 = vld [vmem:[%s1 + $0x1d0] sm:$0xf]
    %v147 = vld [vmem:[%s1 + $0x1d4] sm:$0xf]
    %v148 = vld [vmem:[%s1 + $0x1d8] sm:$0xf]
    %v149 = vld [vmem:[%s1 + $0x1dc] sm:$0xf]
    %v150 = vld [vmem:[%s1 + $0x1e0] sm:$0xf]
    %v151 = vld [vmem:[%s1 + $0x1e4] sm:$0xf]
    %v152 = vld [vmem:[%s1 + $0x1e8] sm:$0xf]
    %v153 = vld [vmem:[%s1 + $0x1ec] sm:$0xf]
    %v154 = vld [vmem:[%s1 + $0x1f0] sm:$0xf]
    %v155 = vld [vmem:[%s1 + $0x1f4] sm:$0xf]
    %v156 = vld [vmem:[%s1 + $0x1f8] sm:$0xf]
    %v157 = vld [vmem:[%s1 + $0x1fc] sm:$0xf]
    %v158 = vld [vmem:[%s1 + $0x200] sm:$0xf]
    %v159 = vld [vmem:[%s1 + $0x204] sm:$0xf]
    %v160 = vld [vmem:[%s1 + $0x208] sm:$0xf]
    %v161 = vld [vmem:[%s1 + $0x20c] sm:$0xf]
    %v162 = vld [vmem:[%s1 + $0x210] sm:$0xf]
    %v163 = vld [vmem:[%s1 + $0x214] sm:$0xf]
    %v164 = vld [vmem:[%s1 + $0x218] sm:$0xf]
    %v165 = vld [vmem:[%s1 + $0x21c] sm:$0xf]
    %v166 = vld [vmem:[%s1 + $0x220] sm:$0xf]
    %v167 = vld [vmem:[%s1 + $0x224] sm:$0xf]
    %v168 = vld [vmem:[%s1 + $0x228] sm:$0xf]
    %v169 = vld [vmem:[%s1 + $0x22c] sm:$0xf]
    %v170 = vld [vmem:[%s1 + $0x230] sm:$0xf]
    %v171 = vld [vmem:[%s1 + $0x234] sm:$0xf]
    %v172 = vld [vmem:[%s1 + $0x238] sm:$0xf]
    %v173 = vld [vmem:[%s1 + $0x23c] sm:$0xf]
    %v174 = vld [vmem:[%s1 + $0x240] sm:$0xf]
    %v175 = vld [vmem:[%s1 + $0x244] sm:$0xf]
    %v176 = vld [vmem:[%s1 + $0x248] sm:$0xf]
    %v177 = vld [vmem:[%s1 + $0x24c] sm:$0xf]
    %v178 = vld [vmem:[%s1 + $0x250] sm:$0xf]
    %v179 = vld [vmem:[%s1 + $0x254] sm:$0xf]
    %v180 = vld [vmem:[%s1 + $0x258] sm:$0xf]
    %v181 = vld [vmem:[%s1 + $0x25c] sm:$0xf]
    %v182 = vld [vmem:[%s1 + $0x260] sm:$0xf]
    %v183 = vld [vmem:[%s1 + $0x264] sm:$0xf]
    %v184 = vld [vmem:[%s1 + $0x268] sm:$0xf]
    %v185 = vld [vmem:[%s1 + $0x26c] sm:$0xf]
    %v186 = vld [vmem:[%s1 + $0x270] sm:$0xf]
    %v187 = vld [vmem:[%s1 + $0x274] sm:$0xf]
    %v188 = vld [vmem:[%s1 + $0x278] sm:$0xf]
    %v189 = vld [vmem:[%s1 + $0x27c] sm:$0xf]
    %v190 = vld [vmem:[%s1 + $0x280] sm:$0xf]
    %v191 = vld [vmem:[%s1 + $0x284] sm:$0xf]
    %v192 = vld [vmem:[%s1 + $0x288] sm:$0xf]
    %v193 = vld [vmem:[%s1 + $0x28c] sm:$0xf]
    %v194 = vld [vmem:[%s1 + $0x290] sm:$0xf]
    %v195 = vld [vmem:[%s1 + $0x294] sm:$0xf]
    %v196 = vld [vmem:[%s1 + $0x298] sm:$0xf]
    %v197 = vld [vmem:[%s1 + $0x29c] sm:$0xf]
    %v198 = vld [vmem:[%s1 + $0x2a0] sm:$0xf]
    %v199 = vld [vmem:[%s1 + $0x2a4] sm:$0xf]
    %v200 = vld [vmem:[%s1 + $0x2a8] sm:$0xf]
    %v201 = vld [vmem:[%s1 + $0x2ac] sm:$0xf]
    %v202 = vld [vmem:[%s1 + $0x2b0] sm:$0xf]
    %v203 = vld [vmem:[%s1 + $0x2b4] sm:$0xf]
    %v204 = vld [vmem:[%s1 + $0x2b8] sm:$0xf]
    %v205 = vld [vmem:[%s1 + $0x2bc] sm:$0xf]
    %v206 = vld [vmem:[%s1 + $0x2c0] sm:$0xf]
    %v207 = vld [vmem:[%s1 + $0x2c4] sm:$0xf]
    %v208 = vld [vmem:[%s1 + $0x2c8] sm:$0xf]
    %v209 = vld [vmem:[%s1 + $0x2cc] sm:$0xf]
    %v210 = vld [vmem:[%s1 + $0x2d0] sm:$0xf]
    %v211 = vld [vmem:[%s1 + $0x2d4] sm:$0xf]
    %v212 = vld [vmem:[%s1 + $0x2d8] sm:$0xf]
    %v213 = vld [vmem:[%s1 + $0x2dc] sm:$0xf]
    %v214 = vld [vmem:[%s1 + $0x2e0] sm:$0xf]
    %v215 = vld [vmem:[%s1 + $0x2e4] sm:$0xf]
    %v216 = vld [vmem:[%s1 + $0x2e8] sm:$0xf]
    %v217 = vld [vmem:[%s1 + $0x2ec] sm:$0xf]
    %v218 = vld [vmem:[%s1 + $0x2f0] sm:$0xf]
    %v219 = vld [vmem:[%s1 + $0x2f4] sm:$0xf]
    %v220 = vld [vmem:[%s1 + $0x2f8] sm:$0xf]
    %v221 = vld [vmem:[%s1 + $0x2fc] sm:$0xf]
    %v224 = vcombine.high %v28, %v28
    %v226 = vunpack.c.l.s4 1966171168
    %v227 = vunpack.c.0.s8 %v226
    %v228 = vlaneseq
    %v229 = vshrl.u32 %v228, 7
    %v230 = vsub.s32 %v227, %v229
    %v231 = vrot.slane %v28, %v230
    %v233 = vunpack.c.l.s4 1966171168
    %v234 = vunpack.c.0.s8 %v233
    %v235 = vlaneseq
    %v236 = vshrl.u32 %v235, 7
    %v237 = vsub.s32 %v234, %v236
    %v238 = vrot.slane %v224, %v237
    %v239 = vcombine.high %v231, %v231
    %v240 = vcombine.high %v238, %v238
    %v242 = vunpack.c.l.s4 1966171168
    %v243 = vunpack.c.0.s8 %v242
    %v244 = vlaneseq
    %v245 = vshrl.u32 %v244, 7
    %v246 = vsub.s32 %v243, %v245
    %v247 = vrot.slane %v231, %v246
    %v249 = vunpack.c.l.s4 1966171168
    %v250 = vunpack.c.0.s8 %v249
    %v251 = vlaneseq
    %v252 = vshrl.u32 %v251, 7
    %v253 = vsub.s32 %v250, %v252
    %v254 = vrot.slane %v238, %v253
    %v256 = vunpack.c.l.s4 1966171168
    %v257 = vunpack.c.0.s8 %v256
    %v258 = vlaneseq
    %v259 = vshrl.u32 %v258, 7
    %v260 = vsub.s32 %v257, %v259
    %v261 = vrot.slane %v239, %v260
    %v263 = vunpack.c.l.s4 1966171168
    %v264 = vunpack.c.0.s8 %v263
    %v265 = vlaneseq
    %v266 = vshrl.u32 %v265, 7
    %v267 = vsub.s32 %v264, %v266
    %v268 = vrot.slane %v240, %v267
    %v269 = vcombine.high %v247, %v247
    %v270 = vcombine.high %v254, %v254
    %v271 = vcombine.high %v261, %v261
    %v272 = vcombine.high %v268, %v268
    %v274 = vunpack.c.l.s4 1966171168
    %v275 = vunpack.c.0.s8 %v274
    %v276 = vlaneseq
    %v277 = vshrl.u32 %v276, 7
    %v278 = vsub.s32 %v275, %v277
    %v279 = vrot.slane %v29, %v278
    %v280 = vcombine.high %v279, %v279
    %v282 = vunpack.c.l.s4 1966171168
    %v283 = vunpack.c.0.s8 %v282
    %v284 = vlaneseq
    %v285 = vshrl.u32 %v284, 7
    %v286 = vsub.s32 %v283, %v285
    %v287 = vrot.slane %v279, %v286
    %v289 = vunpack.c.l.s4 1966171168
    %v290 = vunpack.c.0.s8 %v289
    %v291 = vlaneseq
    %v292 = vshrl.u32 %v291, 7
    %v293 = vsub.s32 %v290, %v292
    %v294 = vrot.slane %v280, %v293
    %v295 = vcombine.high %v287, %v287
    %v296 = vcombine.high %v294, %v294
    %v501 = vunpack.c.l.b16 %v30
    %v502 = vunpack.c.l.b16 %v31
    %v503 = vunpack.c.l.b16 %v32
    %v504 = vunpack.c.l.b16 %v33
    %v505 = vunpack.c.l.b16 %v34
    %v506 = vunpack.c.l.b16 %v35
    %v507 = vunpack.c.l.b16 %v36
    %v508 = vunpack.c.l.b16 %v37
    %v509 = vunpack.c.l.b16 %v38
    %v510 = vunpack.c.l.b16 %v39
    %v511 = vunpack.c.l.b16 %v40
    %v512 = vunpack.c.l.b16 %v41
    %v513 = vunpack.c.l.b16 %v42
    %v514 = vunpack.c.l.b16 %v43
    %v515 = vunpack.c.l.b16 %v44
    %v516 = vunpack.c.l.b16 %v45
    %v517 = vunpack.c.l.b16 %v46
    %v518 = vunpack.c.l.b16 %v47
    %v519 = vunpack.c.l.b16 %v48
    %v520 = vunpack.c.l.b16 %v49
    %v521 = vunpack.c.l.b16 %v50
    %v522 = vunpack.c.l.b16 %v51
    %v523 = vunpack.c.l.b16 %v52
    %v524 = vunpack.c.l.b16 %v53
    %v525 = vunpack.c.l.b16 %v54
    %v526 = vunpack.c.l.b16 %v55
    %v527 = vunpack.c.l.b16 %v56
    %v528 = vunpack.c.l.b16 %v57
    %v529 = vunpack.c.l.b16 %v58
    %v530 = vunpack.c.l.b16 %v59
    %v531 = vunpack.c.l.b16 %v60
    %v532 = vunpack.c.l.b16 %v61
    %v533 = vunpack.c.l.b16 %v62
    %v534 = vunpack.c.l.b16 %v63
    %v535 = vunpack.c.l.b16 %v64
    %v536 = vunpack.c.l.b16 %v65
    %v537 = vunpack.c.l.b16 %v66
    %v538 = vunpack.c.l.b16 %v67
    %v539 = vunpack.c.l.b16 %v68
    %v540 = vunpack.c.l.b16 %v69
    %v541 = vunpack.c.l.b16 %v70
    %v542 = vunpack.c.l.b16 %v71
    %v543 = vunpack.c.l.b16 %v72
    %v544 = vunpack.c.l.b16 %v73
    %v545 = vunpack.c.l.b16 %v74
    %v546 = vunpack.c.l.b16 %v75
    %v547 = vunpack.c.l.b16 %v76
    %v548 = vunpack.c.l.b16 %v77
    %v549 = vunpack.c.l.b16 %v78
    %v550 = vunpack.c.l.b16 %v79
    %v551 = vunpack.c.l.b16 %v80
    %v552 = vunpack.c.l.b16 %v81
    %v553 = vunpack.c.l.b16 %v82
    %v554 = vunpack.c.l.b16 %v83
    %v555 = vunpack.c.l.b16 %v84
    %v556 = vunpack.c.l.b16 %v85
    %v557 = vunpack.c.l.b16 %v86
    %v558 = vunpack.c.l.b16 %v87
    %v559 = vunpack.c.l.b16 %v88
    %v560 = vunpack.c.l.b16 %v89
    %v561 = vunpack.c.l.b16 %v90
    %v562 = vunpack.c.l.b16 %v91
    %v563 = vunpack.c.l.b16 %v92
    %v564 = vunpack.c.l.b16 %v93
    %v565 = vunpack.c.l.b16 %v94
    %v566 = vunpack.c.l.b16 %v95
    %v567 = vunpack.c.l.b16 %v96
    %v568 = vunpack.c.l.b16 %v97
    %v569 = vunpack.c.l.b16 %v98
    %v570 = vunpack.c.l.b16 %v99
    %v571 = vunpack.c.l.b16 %v100
    %v572 = vunpack.c.l.b16 %v101
    %v573 = vunpack.c.l.b16 %v102
    %v574 = vunpack.c.l.b16 %v103
    %v575 = vunpack.c.l.b16 %v104
    %v576 = vunpack.c.l.b16 %v105
    %v577 = vunpack.c.l.b16 %v106
    %v578 = vunpack.c.l.b16 %v107
    %v579 = vunpack.c.l.b16 %v108
    %v580 = vunpack.c.l.b16 %v109
    %v581 = vunpack.c.l.b16 %v110
    %v582 = vunpack.c.l.b16 %v111
    %v583 = vunpack.c.l.b16 %v112
    %v584 = vunpack.c.l.b16 %v113
    %v585 = vunpack.c.l.b16 %v114
    %v586 = vunpack.c.l.b16 %v115
    %v587 = vunpack.c.l.b16 %v116
    %v588 = vunpack.c.l.b16 %v117
    %v589 = vunpack.c.l.b16 %v118
    %v590 = vunpack.c.l.b16 %v119
    %v591 = vunpack.c.l.b16 %v120
    %v592 = vunpack.c.l.b16 %v121
    %v593 = vunpack.c.l.b16 %v122
    %v594 = vunpack.c.l.b16 %v123
    %v595 = vunpack.c.l.b16 %v124
    %v596 = vunpack.c.l.b16 %v125
    %v597 = vunpack.c.l.b16 %v126
    %v598 = vunpack.c.l.b16 %v127
    %v599 = vunpack.c.l.b16 %v128
    %v600 = vunpack.c.l.b16 %v129
    %v601 = vunpack.c.l.b16 %v130
    %v602 = vunpack.c.l.b16 %v131
    %v603 = vunpack.c.l.b16 %v132
    %v604 = vunpack.c.l.b16 %v133
    %v605 = vunpack.c.l.b16 %v134
    %v606 = vunpack.c.l.b16 %v135
    %v607 = vunpack.c.l.b16 %v136
    %v608 = vunpack.c.l.b16 %v137
    %v609 = vunpack.c.l.b16 %v138
    %v610 = vunpack.c.l.b16 %v139
    %v611 = vunpack.c.l.b16 %v140
    %v612 = vunpack.c.l.b16 %v141
    %v613 = vunpack.c.l.b16 %v142
    %v614 = vunpack.c.l.b16 %v143
    %v615 = vunpack.c.l.b16 %v144
    %v616 = vunpack.c.l.b16 %v145
    %v617 = vunpack.c.l.b16 %v146
    %v618 = vunpack.c.l.b16 %v147
    %v619 = vunpack.c.l.b16 %v148
    %v620 = vunpack.c.l.b16 %v149
    %v621 = vunpack.c.l.b16 %v150
    %v622 = vunpack.c.l.b16 %v151
    %v623 = vunpack.c.l.b16 %v152
    %v624 = vunpack.c.l.b16 %v153
    %v625 = vunpack.c.l.b16 %v154
    %v626 = vunpack.c.l.b16 %v155
    %v627 = vunpack.c.l.b16 %v156
    %v628 = vunpack.c.l.b16 %v157
    %v629 = vunpack.c.l.b16 %v158
    %v630 = vunpack.c.l.b16 %v159
    %v631 = vunpack.c.l.b16 %v160
    %v632 = vunpack.c.l.b16 %v161
    %v633 = vunpack.c.l.b16 %v162
    %v634 = vunpack.c.l.b16 %v163
    %v635 = vunpack.c.l.b16 %v164
    %v636 = vunpack.c.l.b16 %v165
    %v637 = vunpack.c.l.b16 %v166
    %v638 = vunpack.c.l.b16 %v167
    %v639 = vunpack.c.l.b16 %v168
    %v640 = vunpack.c.l.b16 %v169
    %v641 = vunpack.c.l.b16 %v170
    %v642 = vunpack.c.l.b16 %v171
    %v643 = vunpack.c.l.b16 %v172
    %v644 = vunpack.c.l.b16 %v173
    %v645 = vunpack.c.l.b16 %v174
    %v646 = vunpack.c.l.b16 %v175
    %v647 = vunpack.c.l.b16 %v176
    %v648 = vunpack.c.l.b16 %v177
    %v649 = vunpack.c.l.b16 %v178
    %v650 = vunpack.c.l.b16 %v179
    %v651 = vunpack.c.l.b16 %v180
    %v652 = vunpack.c.l.b16 %v181
    %v653 = vunpack.c.l.b16 %v182
    %v654 = vunpack.c.l.b16 %v183
    %v655 = vunpack.c.l.b16 %v184
    %v656 = vunpack.c.l.b16 %v185
    %v657 = vunpack.c.l.b16 %v186
    %v658 = vunpack.c.l.b16 %v187
    %v659 = vunpack.c.l.b16 %v188
    %v660 = vunpack.c.l.b16 %v189
    %v661 = vunpack.c.l.b16 %v190
    %v662 = vunpack.c.l.b16 %v191
    %v663 = vunpack.c.l.b16 %v192
    %v664 = vunpack.c.l.b16 %v193
    %v665 = vunpack.c.l.b16 %v194
    %v666 = vunpack.c.l.b16 %v195
    %v667 = vunpack.c.l.b16 %v196
    %v668 = vunpack.c.l.b16 %v197
    %v669 = vunpack.c.l.b16 %v198
    %v670 = vunpack.c.l.b16 %v199
    %v671 = vunpack.c.l.b16 %v200
    %v672 = vunpack.c.l.b16 %v201
    %v673 = vunpack.c.l.b16 %v202
    %v674 = vunpack.c.l.b16 %v203
    %v675 = vunpack.c.l.b16 %v204
    %v676 = vunpack.c.l.b16 %v205
    %v677 = vunpack.c.l.b16 %v206
    %v678 = vunpack.c.l.b16 %v207
    %v679 = vunpack.c.l.b16 %v208
    %v680 = vunpack.c.l.b16 %v209
    %v681 = vunpack.c.l.b16 %v210
    %v682 = vunpack.c.l.b16 %v211
    %v683 = vunpack.c.l.b16 %v212
    %v684 = vunpack.c.l.b16 %v213
    %v685 = vunpack.c.l.b16 %v214
    %v686 = vunpack.c.l.b16 %v215
    %v687 = vunpack.c.l.b16 %v216
    %v688 = vunpack.c.l.b16 %v217
    %v689 = vunpack.c.l.b16 %v218
    %v690 = vunpack.c.l.b16 %v219
    %v691 = vunpack.c.l.b16 %v220
    %v692 = vunpack.c.l.b16 %v221
    %v693 = vpack.c.b16 %v502, %v501
    %v694 = vpack.c.b16 %v504, %v503
    %v695 = vpack.c.b16 %v506, %v505
    %v696 = vpack.c.b16 %v508, %v507
    %v697 = vpack.c.b16 %v510, %v509
    %v698 = vpack.c.b16 %v512, %v511
    %v699 = vpack.c.b16 %v514, %v513
    %v700 = vpack.c.b16 %v516, %v515
    %v701 = vpack.c.b16 %v518, %v517
    %v702 = vpack.c.b16 %v520, %v519
    %v703 = vpack.c.b16 %v522, %v521
    %v704 = vpack.c.b16 %v524, %v523
    %v705 = vpack.c.b16 %v526, %v525
    %v706 = vpack.c.b16 %v528, %v527
    %v707 = vpack.c.b16 %v530, %v529
    %v708 = vpack.c.b16 %v532, %v531
    %v709 = vpack.c.b16 %v534, %v533
    %v710 = vpack.c.b16 %v536, %v535
    %v711 = vpack.c.b16 %v538, %v537
    %v712 = vpack.c.b16 %v540, %v539
    %v713 = vpack.c.b16 %v542, %v541
    %v714 = vpack.c.b16 %v544, %v543
    %v715 = vpack.c.b16 %v546, %v545
    %v716 = vpack.c.b16 %v548, %v547
    %v717 = vpack.c.b16 %v550, %v549
    %v718 = vpack.c.b16 %v552, %v551
    %v719 = vpack.c.b16 %v554, %v553
    %v720 = vpack.c.b16 %v556, %v555
    %v721 = vpack.c.b16 %v558, %v557
    %v722 = vpack.c.b16 %v560, %v559
    %v723 = vpack.c.b16 %v562, %v561
    %v724 = vpack.c.b16 %v564, %v563
    %v725 = vpack.c.b16 %v566, %v565
    %v726 = vpack.c.b16 %v568, %v567
    %v727 = vpack.c.b16 %v570, %v569
    %v728 = vpack.c.b16 %v572, %v571
    %v729 = vpack.c.b16 %v574, %v573
    %v730 = vpack.c.b16 %v576, %v575
    %v731 = vpack.c.b16 %v578, %v577
    %v732 = vpack.c.b16 %v580, %v579
    %v733 = vpack.c.b16 %v582, %v581
    %v734 = vpack.c.b16 %v584, %v583
    %v735 = vpack.c.b16 %v586, %v585
    %v736 = vpack.c.b16 %v588, %v587
    %v737 = vpack.c.b16 %v590, %v589
    %v738 = vpack.c.b16 %v592, %v591
    %v739 = vpack.c.b16 %v594, %v593
    %v740 = vpack.c.b16 %v596, %v595
    %v741 = vpack.c.b16 %v598, %v597
    %v742 = vpack.c.b16 %v600, %v599
    %v743 = vpack.c.b16 %v602, %v601
    %v744 = vpack.c.b16 %v604, %v603
    %v745 = vpack.c.b16 %v606, %v605
    %v746 = vpack.c.b16 %v608, %v607
    %v747 = vpack.c.b16 %v610, %v609
    %v748 = vpack.c.b16 %v612, %v611
    %v749 = vpack.c.b16 %v614, %v613
    %v750 = vpack.c.b16 %v616, %v615
    %v751 = vpack.c.b16 %v618, %v617
    %v752 = vpack.c.b16 %v620, %v619
    %v753 = vpack.c.b16 %v622, %v621
    %v754 = vpack.c.b16 %v624, %v623
    %v755 = vpack.c.b16 %v626, %v625
    %v756 = vpack.c.b16 %v628, %v627
    %v757 = vpack.c.b16 %v630, %v629
    %v758 = vpack.c.b16 %v632, %v631
    %v759 = vpack.c.b16 %v634, %v633
    %v760 = vpack.c.b16 %v636, %v635
    %v761 = vpack.c.b16 %v638, %v637
    %v762 = vpack.c.b16 %v640, %v639
    %v763 = vpack.c.b16 %v642, %v641
    %v764 = vpack.c.b16 %v644, %v643
    %v765 = vpack.c.b16 %v646, %v645
    %v766 = vpack.c.b16 %v648, %v647
    %v767 = vpack.c.b16 %v650, %v649
    %v768 = vpack.c.b16 %v652, %v651
    %v769 = vpack.c.b16 %v654, %v653
    %v770 = vpack.c.b16 %v656, %v655
    %v771 = vpack.c.b16 %v658, %v657
    %v772 = vpack.c.b16 %v660, %v659
    %v773 = vpack.c.b16 %v662, %v661
    %v774 = vpack.c.b16 %v664, %v663
    %v775 = vpack.c.b16 %v666, %v665
    %v776 = vpack.c.b16 %v668, %v667
    %v777 = vpack.c.b16 %v670, %v669
    %v778 = vpack.c.b16 %v672, %v671
    %v779 = vpack.c.b16 %v674, %v673
    %v780 = vpack.c.b16 %v676, %v675
    %v781 = vpack.c.b16 %v678, %v677
    %v782 = vpack.c.b16 %v680, %v679
    %v783 = vpack.c.b16 %v682, %v681
    %v784 = vpack.c.b16 %v684, %v683
    %v785 = vpack.c.b16 %v686, %v685
    %v786 = vpack.c.b16 %v688, %v687
    %v787 = vpack.c.b16 %v690, %v689
    %v788 = vpack.c.b16 %v692, %v691
    %885 = vmatprep.subr.bf16.mxu0 0
    %886 = vmatpush1.bf16.msra.mxu0 %v693
    %887 = vmatprep.subr.bf16.mxu0 0
    %888 = vmatpush1.bf16.msra.mxu0 %v694
    %889 = vmatprep.subr.bf16.mxu0 0
    %890 = vmatpush1.bf16.msra.mxu0 %v695
    %891 = vmatprep.subr.bf16.mxu0 0
    %892 = vmatpush1.bf16.msra.mxu0 %v696
    %893 = vmatprep.subr.bf16.mxu0 0
    %894 = vmatpush1.bf16.msra.mxu0 %v697
    %895 = vmatprep.subr.bf16.mxu0 0
    %896 = vmatpush1.bf16.msra.mxu0 %v698
    %897 = vmatprep.subr.bf16.mxu0 0
    %898 = vmatpush1.bf16.msra.mxu0 %v699
    %899 = vmatprep.subr.bf16.mxu0 0
    %900 = vmatpush1.bf16.msra.mxu0 %v700
    %901 = vmatprep.subr.bf16.mxu0 0
    %902 = vmatpush1.bf16.msra.mxu0 %v701
    %903 = vmatprep.subr.bf16.mxu0 0
    %904 = vmatpush1.bf16.msra.mxu0 %v702
    %905 = vmatprep.subr.bf16.mxu0 0
    %906 = vmatpush1.bf16.msra.mxu0 %v703
    %907 = vmatprep.subr.bf16.mxu0 0
    %908 = vmatpush1.bf16.msra.mxu0 %v704
    %909 = vmatprep.subr.bf16.mxu0 0
    %910 = vmatpush1.bf16.msra.mxu0 %v705
    %911 = vmatprep.subr.bf16.mxu0 0
    %912 = vmatpush1.bf16.msra.mxu0 %v706
    %913 = vmatprep.subr.bf16.mxu0 0
    %914 = vmatpush1.bf16.msra.mxu0 %v707
    %915 = vmatprep.subr.bf16.mxu0 0
    %916 = vmatpush1.bf16.msra.mxu0 %v708
    %917 = vmatprep.mubr.bf16.mxu0 %v261
    %918 = vmatmul.mubr.bf16.gmra.mrb[0].mxu0 %v247
    %v919 = vpop.f32.mrb[0].mxu0
    %v920 = vadd.f32 0.0, %v919
    %v921 = vpop.f32.mrb[0].mxu0
    %v922 = vpop.f32.mrb[0].mxu0
    %v923 = vpop.f32.mrb[0].mxu0
    %924 = vdwg.mxu0
    %925 = vmatprep.subr.bf16.mxu0 0
    %926 = vmatpush1.bf16.msra.mxu0 %v709
    %927 = vmatprep.subr.bf16.mxu0 0
    %928 = vmatpush1.bf16.msra.mxu0 %v710
    %929 = vmatprep.subr.bf16.mxu0 0
    %930 = vmatpush1.bf16.msra.mxu0 %v711
    %931 = vmatprep.subr.bf16.mxu0 0
    %932 = vmatpush1.bf16.msra.mxu0 %v712
    %933 = vmatprep.subr.bf16.mxu0 0
    %934 = vmatpush1.bf16.msra.mxu0 %v713
    %935 = vmatprep.subr.bf16.mxu0 0
    %936 = vmatpush1.bf16.msra.mxu0 %v714
    %937 = vmatprep.subr.bf16.mxu0 0
    %938 = vmatpush1.bf16.msra.mxu0 %v715
    %939 = vmatprep.subr.bf16.mxu0 0
    %940 = vmatpush1.bf16.msra.mxu0 %v716
    %941 = vmatprep.subr.bf16.mxu0 0
    %942 = vmatpush1.bf16.msra.mxu0 %v717
    %943 = vmatprep.subr.bf16.mxu0 0
    %944 = vmatpush1.bf16.msra.mxu0 %v718
    %945 = vmatprep.subr.bf16.mxu0 0
    %946 = vmatpush1.bf16.msra.mxu0 %v719
    %947 = vmatprep.subr.bf16.mxu0 0
    %948 = vmatpush1.bf16.msra.mxu0 %v720
    %949 = vmatprep.subr.bf16.mxu0 0
    %950 = vmatpush1.bf16.msra.mxu0 %v721
    %951 = vmatprep.subr.bf16.mxu0 0
    %952 = vmatpush1.bf16.msra.mxu0 %v722
    %953 = vmatprep.subr.bf16.mxu0 0
    %954 = vmatpush1.bf16.msra.mxu0 %v723
    %955 = vmatprep.subr.bf16.mxu0 0
    %956 = vmatpush1.bf16.msra.mxu0 %v724
    %957 = vmatprep.mubr.bf16.mxu0 %v271
    %958 = vmatmul.mubr.bf16.gmra.mrb[0].mxu0 %v269
    %v959 = vpop.f32.mrb[0].mxu0
    %v960 = vadd.f32 %v920, %v959
    %v961 = vpop.f32.mrb[0].mxu0
    %v962 = vpop.f32.mrb[0].mxu0
    %v963 = vpop.f32.mrb[0].mxu0
    %964 = vdwg.mxu0
    %965 = vmatprep.subr.bf16.mxu0 0
    %966 = vmatpush1.bf16.msra.mxu0 %v725
    %967 = vmatprep.subr.bf16.mxu0 0
    %968 = vmatpush1.bf16.msra.mxu0 %v726
    %969 = vmatprep.subr.bf16.mxu0 0
    %970 = vmatpush1.bf16.msra.mxu0 %v727
    %971 = vmatprep.subr.bf16.mxu0 0
    %972 = vmatpush1.bf16.msra.mxu0 %v728
    %973 = vmatprep.subr.bf16.mxu0 0
    %974 = vmatpush1.bf16.msra.mxu0 %v729
    %975 = vmatprep.subr.bf16.mxu0 0
    %976 = vmatpush1.bf16.msra.mxu0 %v730
    %977 = vmatprep.subr.bf16.mxu0 0
    %978 = vmatpush1.bf16.msra.mxu0 %v731
    %979 = vmatprep.subr.bf16.mxu0 0
    %980 = vmatpush1.bf16.msra.mxu0 %v732
    %981 = vmatprep.subr.bf16.mxu0 0
    %982 = vmatpush1.bf16.msra.mxu0 %v733
    %983 = vmatprep.subr.bf16.mxu0 0
    %984 = vmatpush1.bf16.msra.mxu0 %v734
    %985 = vmatprep.subr.bf16.mxu0 0
    %986 = vmatpush1.bf16.msra.mxu0 %v735
    %987 = vmatprep.subr.bf16.mxu0 0
    %988 = vmatpush1.bf16.msra.mxu0 %v736
    %989 = vmatprep.subr.bf16.mxu0 0
    %990 = vmatpush1.bf16.msra.mxu0 %v737
    %991 = vmatprep.subr.bf16.mxu0 0
    %992 = vmatpush1.bf16.msra.mxu0 %v738
    %993 = vmatprep.subr.bf16.mxu0 0
    %994 = vmatpush1.bf16.msra.mxu0 %v739
    %995 = vmatprep.subr.bf16.mxu0 0
    %996 = vmatpush1.bf16.msra.mxu0 %v740
    %997 = vmatprep.mubr.bf16.mxu0 %v268
    %998 = vmatmul.mubr.bf16.gmra.mrb[0].mxu0 %v254
    %v999 = vpop.f32.mrb[0].mxu0
    %v1000 = vadd.f32 %v960, %v999
    %v1001 = vpop.f32.mrb[0].mxu0
    %v1002 = vpop.f32.mrb[0].mxu0
    %v1003 = vpop.f32.mrb[0].mxu0
    %1004 = vdwg.mxu0
    %1005 = vmatprep.subr.bf16.mxu0 0
    %1006 = vmatpush1.bf16.msra.mxu0 %v741
    %1007 = vmatprep.subr.bf16.mxu0 0
    %1008 = vmatpush1.bf16.msra.mxu0 %v742
    %1009 = vmatprep.subr.bf16.mxu0 0
    %1010 = vmatpush1.bf16.msra.mxu0 %v743
    %1011 = vmatprep.subr.bf16.mxu0 0
    %1012 = vmatpush1.bf16.msra.mxu0 %v744
    %1013 = vmatprep.subr.bf16.mxu0 0
    %1014 = vmatpush1.bf16.msra.mxu0 %v745
    %1015 = vmatprep.subr.bf16.mxu0 0
    %1016 = vmatpush1.bf16.msra.mxu0 %v746
    %1017 = vmatprep.subr.bf16.mxu0 0
    %1018 = vmatpush1.bf16.msra.mxu0 %v747
    %1019 = vmatprep.subr.bf16.mxu0 0
    %1020 = vmatpush1.bf16.msra.mxu0 %v748
    %1021 = vmatprep.subr.bf16.mxu0 0
    %1022 = vmatpush1.bf16.msra.mxu0 %v749
    %1023 = vmatprep.subr.bf16.mxu0 0
    %1024 = vmatpush1.bf16.msra.mxu0 %v750
    %1025 = vmatprep.subr.bf16.mxu0 0
    %1026 = vmatpush1.bf16.msra.mxu0 %v751
    %1027 = vmatprep.subr.bf16.mxu0 0
    %1028 = vmatpush1.bf16.msra.mxu0 %v752
    %1029 = vmatprep.subr.bf16.mxu0 0
    %1030 = vmatpush1.bf16.msra.mxu0 %v753
    %1031 = vmatprep.subr.bf16.mxu0 0
    %1032 = vmatpush1.bf16.msra.mxu0 %v754
    %1033 = vmatprep.subr.bf16.mxu0 0
    %1034 = vmatpush1.bf16.msra.mxu0 %v755
    %1035 = vmatprep.subr.bf16.mxu0 0
    %1036 = vmatpush1.bf16.msra.mxu0 %v756
    %1037 = vmatprep.mubr.bf16.mxu0 %v272
    %1038 = vmatmul.mubr.bf16.gmra.mrb[0].mxu0 %v270
    %v1039 = vpop.f32.mrb[0].mxu0
    %v1040 = vadd.f32 %v1000, %v1039
    %v1041 = vpop.f32.mrb[0].mxu0
    %v1042 = vpop.f32.mrb[0].mxu0
    %v1043 = vpop.f32.mrb[0].mxu0
    %1044 = vdwg.mxu0
    %1045 = vmatprep.subr.bf16.mxu0 0
    %1046 = vmatpush1.bf16.msra.mxu0 %v757
    %1047 = vmatprep.subr.bf16.mxu0 0
    %1048 = vmatpush1.bf16.msra.mxu0 %v758
    %1049 = vmatprep.subr.bf16.mxu0 0
    %1050 = vmatpush1.bf16.msra.mxu0 %v759
    %1051 = vmatprep.subr.bf16.mxu0 0
    %1052 = vmatpush1.bf16.msra.mxu0 %v760
    %1053 = vmatprep.subr.bf16.mxu0 0
    %1054 = vmatpush1.bf16.msra.mxu0 %v761
    %1055 = vmatprep.subr.bf16.mxu0 0
    %1056 = vmatpush1.bf16.msra.mxu0 %v762
    %1057 = vmatprep.subr.bf16.mxu0 0
    %1058 = vmatpush1.bf16.msra.mxu0 %v763
    %1059 = vmatprep.subr.bf16.mxu0 0
    %1060 = vmatpush1.bf16.msra.mxu0 %v764
    %1061 = vmatprep.subr.bf16.mxu0 0
    %1062 = vmatpush1.bf16.msra.mxu0 %v765
    %1063 = vmatprep.subr.bf16.mxu0 0
    %1064 = vmatpush1.bf16.msra.mxu0 %v766
    %1065 = vmatprep.subr.bf16.mxu0 0
    %1066 = vmatpush1.bf16.msra.mxu0 %v767
    %1067 = vmatprep.subr.bf16.mxu0 0
    %1068 = vmatpush1.bf16.msra.mxu0 %v768
    %1069 = vmatprep.subr.bf16.mxu0 0
    %1070 = vmatpush1.bf16.msra.mxu0 %v769
    %1071 = vmatprep.subr.bf16.mxu0 0
    %1072 = vmatpush1.bf16.msra.mxu0 %v770
    %1073 = vmatprep.subr.bf16.mxu0 0
    %1074 = vmatpush1.bf16.msra.mxu0 %v771
    %1075 = vmatprep.subr.bf16.mxu0 0
    %1076 = vmatpush1.bf16.msra.mxu0 %v772
    %1077 = vmatprep.mubr.bf16.mxu0 %v294
    %1078 = vmatmul.mubr.bf16.gmra.mrb[0].mxu0 %v287
    %v1079 = vpop.f32.mrb[0].mxu0
    %v1080 = vadd.f32 %v1040, %v1079
    %v1081 = vpop.f32.mrb[0].mxu0
    %v1082 = vpop.f32.mrb[0].mxu0
    %v1083 = vpop.f32.mrb[0].mxu0
    %1084 = vdwg.mxu0
    %1085 = vmatprep.subr.bf16.mxu0 0
    %1086 = vmatpush1.bf16.msra.mxu0 %v773
    %1087 = vmatprep.subr.bf16.mxu0 0
    %1088 = vmatpush1.bf16.msra.mxu0 %v774
    %1089 = vmatprep.subr.bf16.mxu0 0
    %1090 = vmatpush1.bf16.msra.mxu0 %v775
    %1091 = vmatprep.subr.bf16.mxu0 0
    %1092 = vmatpush1.bf16.msra.mxu0 %v776
    %1093 = vmatprep.subr.bf16.mxu0 0
    %1094 = vmatpush1.bf16.msra.mxu0 %v777
    %1095 = vmatprep.subr.bf16.mxu0 0
    %1096 = vmatpush1.bf16.msra.mxu0 %v778
    %1097 = vmatprep.subr.bf16.mxu0 0
    %1098 = vmatpush1.bf16.msra.mxu0 %v779
    %1099 = vmatprep.subr.bf16.mxu0 0
    %1100 = vmatpush1.bf16.msra.mxu0 %v780
    %1101 = vmatprep.subr.bf16.mxu0 0
    %1102 = vmatpush1.bf16.msra.mxu0 %v781
    %1103 = vmatprep.subr.bf16.mxu0 0
    %1104 = vmatpush1.bf16.msra.mxu0 %v782
    %1105 = vmatprep.subr.bf16.mxu0 0
    %1106 = vmatpush1.bf16.msra.mxu0 %v783
    %1107 = vmatprep.subr.bf16.mxu0 0
    %1108 = vmatpush1.bf16.msra.mxu0 %v784
    %1109 = vmatprep.subr.bf16.mxu0 0
    %1110 = vmatpush1.bf16.msra.mxu0 %v785
    %1111 = vmatprep.subr.bf16.mxu0 0
    %1112 = vmatpush1.bf16.msra.mxu0 %v786
    %1113 = vmatprep.subr.bf16.mxu0 0
    %1114 = vmatpush1.bf16.msra.mxu0 %v787
    %1115 = vmatprep.subr.bf16.mxu0 0
    %1116 = vmatpush1.bf16.msra.mxu0 %v788
    %1117 = vmatprep.mubr.bf16.mxu0 %v296
    %1118 = vmatmul.mubr.bf16.gmra.mrb[0].mxu0 %v295
    %v1119 = vpop.f32.mrb[0].mxu0
    %v1120 = vadd.f32 %v1080, %v1119
    %v1121 = vpop.f32.mrb[0].mxu0
    %v1122 = vpop.f32.mrb[0].mxu0
    %v1123 = vpop.f32.mrb[0].mxu0
    %1124 = vdwg.mxu0
    %1126 = vrot.lane.b32.xlu0 %v1120, 120
    %v1127 = vpop.permute.xlu0 %1126
    %v1129 = vmax.f32 %v1120, %v1127
    %v1130 = vld [vmem:[%s2] sm:$0x1]
    %v1132 = vlaneseq
    %v1133 = vshrl.u32 %v1132, 7
    %v1134 = vsub.s32 0, %v1133
    %v1135 = vrot.slane %v1130, %v1134
    %v1137 = vadd.f32 %v1129, %v1135
    %v1138 = vmax.f32 %v1137, 0.0
    %v1139 = vld [vmem:[%s3] sm:$0x1]
    %v1141 = vlaneseq
    %v1142 = vshrl.u32 %v1141, 7
    %v1143 = vsub.s32 0, %v1142
    %v1144 = vrot.slane %v1139, %v1143
    %1145 = vrot.lane.b32.xlu0 %v1144, 16
    %v1146 = vpop.permute.xlu0 %1145
    %v1148 = vadd.f32 %v1120, %v1146
    %v1149 = vmax.f32 %v1148, 0.0
    %v1150 = vld [vmem:[%s4] sm:$0x1]
    %v1152 = vlaneseq
    %v1153 = vshrl.u32 %v1152, 7
    %v1154 = vsub.s32 0, %v1153
    %v1155 = vrot.slane %v1150, %v1154
    %1156 = vrot.lane.b32.xlu0 %v1155, 24
    %v1157 = vpop.permute.xlu0 %1156
    %v1159 = vadd.f32 %v1120, %v1157
    %v1160 = vld [vmem:[%s6] sm:$0x3f]
    %v1161 = vld [vmem:[%s5] sm:$0xff]
    %v1162 = vld [vmem:[%s5 + $0x8] sm:$0xff]
    %v1163 = vld [vmem:[%s5 + $0x10] sm:$0xff]
    %v1164 = vpack.c.bf16 %v1138, %v1138
    %v1168 = vunpack.c.l.b16 %v1161
    %v1169 = vunpack.c.h.b16 %v1161
    %v1170 = vunpack.c.l.b16 %v1162
    %v1171 = vunpack.c.h.b16 %v1162
    %v1172 = vunpack.c.l.b16 %v1163
    %v1173 = vunpack.c.h.b16 %v1163
    %v1174 = vpack.c.b16 %v1168, %v1168
    %v1175 = vpack.c.b16 %v1169, %v1169
    %v1176 = vpack.c.b16 %v1170, %v1170
    %v1177 = vpack.c.b16 %v1171, %v1171
    %v1178 = vpack.c.b16 %v1172, %v1172
    %v1179 = vpack.c.b16 %v1173, %v1173
    %vm1180 = vcmask 64512
    %v1182 = vsel %vm1180, %v1164, 0
    %vm1184 = vcmask 1043456
    %v1186 = vsel %vm1184, %v1174, 0
    %v1189 = vsel %vm1184, %v1175, 0
    %v1192 = vsel %vm1184, %v1176, 0
    %v1195 = vsel %vm1184, %v1177, 0
    %v1198 = vsel %vm1184, %v1178, 0
    %v1201 = vsel %vm1184, %v1179, 0
    %1203 = vmatprep.subr.bf16.mxu0 %v1189
    %1204 = vmatpush1.bf16.msra.mxu0 %v1186
    %1205 = vmatprep.subr.bf16.mxu0 0
    %1206 = vmatpush1.bf16.msra.mxu0 0
    %1207 = vmatprep.subr.bf16.mxu0 0
    %1208 = vmatpush1.bf16.msra.mxu0 0
    %1209 = vmatprep.subr.bf16.mxu0 0
    %1210 = vmatpush1.bf16.msra.mxu0 0
    %1211 = vmatprep.subr.bf16.mxu0 0
    %1212 = vmatpush1.bf16.msra.mxu0 0
    %1213 = vmatprep.subr.bf16.mxu0 0
    %1214 = vmatpush1.bf16.msra.mxu0 0
    %1215 = vmatprep.subr.bf16.mxu0 0
    %1216 = vmatpush1.bf16.msra.mxu0 0
    %1217 = vmatprep.subr.bf16.mxu0 0
    %1218 = vmatpush1.bf16.msra.mxu0 0
    %1219 = vmatprep.subr.bf16.mxu0 0
    %1220 = vmatpush1.bf16.msra.mxu0 0
    %1221 = vmatprep.subr.bf16.mxu0 0
    %1222 = vmatpush1.bf16.msra.mxu0 0
    %1223 = vmatprep.subr.bf16.mxu0 0
    %1224 = vmatpush1.bf16.msra.mxu0 0
    %1225 = vmatprep.subr.bf16.mxu0 0
    %1226 = vmatpush1.bf16.msra.mxu0 0
    %1227 = vmatprep.subr.bf16.mxu0 0
    %1228 = vmatpush1.bf16.msra.mxu0 0
    %1229 = vmatprep.subr.bf16.mxu0 0
    %1230 = vmatpush1.bf16.msra.mxu0 0
    %1231 = vmatprep.subr.bf16.mxu0 0
    %1232 = vmatpush1.bf16.msra.mxu0 0
    %1233 = vmatprep.subr.bf16.mxu0 0
    %1234 = vmatpush1.bf16.msra.mxu0 0
    %1235 = vmatprep.mubr.bf16.mxu0 0
    %1236 = vmatmul.mubr.bf16.gmra.mrb[0].mxu0 %v1182
    %v1237 = vpop.f32.mrb[0].mxu0
    %v1238 = vadd.f32 0.0, %v1237
    %v1239 = vpop.f32.mrb[0].mxu0
    %v1240 = vadd.f32 0.0, %v1239
    %v1241 = vpop.f32.mrb[0].mxu0
    %v1242 = vpop.f32.mrb[0].mxu0
    %1243 = vdwg.mxu0
    %1244 = vmatprep.subr.bf16.mxu0 %v1195
    %1245 = vmatpush1.bf16.msra.mxu0 %v1192
    %1246 = vmatprep.subr.bf16.mxu0 0
    %1247 = vmatpush1.bf16.msra.mxu0 0
    %1248 = vmatprep.subr.bf16.mxu0 0
    %1249 = vmatpush1.bf16.msra.mxu0 0
    %1250 = vmatprep.subr.bf16.mxu0 0
    %1251 = vmatpush1.bf16.msra.mxu0 0
    %1252 = vmatprep.subr.bf16.mxu0 0
    %1253 = vmatpush1.bf16.msra.mxu0 0
    %1254 = vmatprep.subr.bf16.mxu0 0
    %1255 = vmatpush1.bf16.msra.mxu0 0
    %1256 = vmatprep.subr.bf16.mxu0 0
    %1257 = vmatpush1.bf16.msra.mxu0 0
    %1258 = vmatprep.subr.bf16.mxu0 0
    %1259 = vmatpush1.bf16.msra.mxu0 0
    %1260 = vmatprep.subr.bf16.mxu0 0
    %1261 = vmatpush1.bf16.msra.mxu0 0
    %1262 = vmatprep.subr.bf16.mxu0 0
    %1263 = vmatpush1.bf16.msra.mxu0 0
    %1264 = vmatprep.subr.bf16.mxu0 0
    %1265 = vmatpush1.bf16.msra.mxu0 0
    %1266 = vmatprep.subr.bf16.mxu0 0
    %1267 = vmatpush1.bf16.msra.mxu0 0
    %1268 = vmatprep.subr.bf16.mxu0 0
    %1269 = vmatpush1.bf16.msra.mxu0 0
    %1270 = vmatprep.subr.bf16.mxu0 0
    %1271 = vmatpush1.bf16.msra.mxu0 0
    %1272 = vmatprep.subr.bf16.mxu0 0
    %1273 = vmatpush1.bf16.msra.mxu0 0
    %1274 = vmatprep.subr.bf16.mxu0 0
    %1275 = vmatpush1.bf16.msra.mxu0 0
    %1276 = vmatprep.mubr.bf16.mxu0 0
    %1277 = vmatmul.mubr.bf16.gmra.mrb[0].mxu0 %v1182
    %v1278 = vpop.f32.mrb[0].mxu0
    %v1279 = vadd.f32 0.0, %v1278
    %v1280 = vpop.f32.mrb[0].mxu0
    %v1281 = vadd.f32 0.0, %v1280
    %v1282 = vpop.f32.mrb[0].mxu0
    %v1283 = vpop.f32.mrb[0].mxu0
    %1284 = vdwg.mxu0
    %1285 = vmatprep.subr.bf16.mxu0 %v1201
    %1286 = vmatpush1.bf16.msra.mxu0 %v1198
    %1287 = vmatprep.subr.bf16.mxu0 0
    %1288 = vmatpush1.bf16.msra.mxu0 0
    %1289 = vmatprep.subr.bf16.mxu0 0
    %1290 = vmatpush1.bf16.msra.mxu0 0
    %1291 = vmatprep.subr.bf16.mxu0 0
    %1292 = vmatpush1.bf16.msra.mxu0 0
    %1293 = vmatprep.subr.bf16.mxu0 0
    %1294 = vmatpush1.bf16.msra.mxu0 0
    %1295 = vmatprep.subr.bf16.mxu0 0
    %1296 = vmatpush1.bf16.msra.mxu0 0
    %1297 = vmatprep.subr.bf16.mxu0 0
    %1298 = vmatpush1.bf16.msra.mxu0 0
    %1299 = vmatprep.subr.bf16.mxu0 0
    %1300 = vmatpush1.bf16.msra.mxu0 0
    %1301 = vmatprep.subr.bf16.mxu0 0
    %1302 = vmatpush1.bf16.msra.mxu0 0
    %1303 = vmatprep.subr.bf16.mxu0 0
    %1304 = vmatpush1.bf16.msra.mxu0 0
    %1305 = vmatprep.subr.bf16.mxu0 0
    %1306 = vmatpush1.bf16.msra.mxu0 0
    %1307 = vmatprep.subr.bf16.mxu0 0
    %1308 = vmatpush1.bf16.msra.mxu0 0
    %1309 = vmatprep.subr.bf16.mxu0 0
    %1310 = vmatpush1.bf16.msra.mxu0 0
    %1311 = vmatprep.subr.bf16.mxu0 0
    %1312 = vmatpush1.bf16.msra.mxu0 0
    %1313 = vmatprep.subr.bf16.mxu0 0
    %1314 = vmatpush1.bf16.msra.mxu0 0
    %1315 = vmatprep.subr.bf16.mxu0 0
    %1316 = vmatpush1.bf16.msra.mxu0 0
    %1317 = vmatprep.mubr.bf16.mxu0 0
    %1318 = vmatmul.mubr.bf16.gmra.mrb[0].mxu0 %v1182
    %v1319 = vpop.f32.mrb[0].mxu0
    %v1320 = vadd.f32 0.0, %v1319
    %v1321 = vpop.f32.mrb[0].mxu0
    %v1322 = vadd.f32 0.0, %v1321
    %v1323 = vpop.f32.mrb[0].mxu0
    %v1324 = vpop.f32.mrb[0].mxu0
    %1325 = vdwg.mxu0
    %v1327 = vlaneseq
    %v1328 = vshrl.u32 %v1327, 7
    %v1329 = vsub.s32 0, %v1328
    %v1330 = vrot.slane %v1160, %v1329
    %v1331 = vlaneseq
    %v1332 = vshrl.u32 %v1331, 7
    %v1333 = vsub.s32 1, %v1332
    %v1334 = vrot.slane %v1160, %v1333
    %v1335 = vlaneseq
    %v1336 = vshrl.u32 %v1335, 7
    %v1337 = vsub.s32 2, %v1336
    %v1338 = vrot.slane %v1160, %v1337
    %v1339 = vlaneseq
    %v1340 = vshrl.u32 %v1339, 7
    %v1341 = vsub.s32 3, %v1340
    %v1342 = vrot.slane %v1160, %v1341
    %v1343 = vlaneseq
    %v1344 = vshrl.u32 %v1343, 7
    %v1345 = vsub.s32 4, %v1344
    %v1346 = vrot.slane %v1160, %v1345
    %v1347 = vlaneseq
    %v1348 = vshrl.u32 %v1347, 7
    %v1349 = vsub.s32 5, %v1348
    %v1350 = vrot.slane %v1160, %v1349
    %v1357 = vadd.f32 %v1330, %v1238
    %v1358 = vadd.f32 %v1334, %v1240
    %v1359 = vadd.f32 %v1338, %v1279
    %v1360 = vadd.f32 %v1342, %v1281
    %v1361 = vadd.f32 %v1346, %v1320
    %v1362 = vadd.f32 %v1350, %v1322
    %v1363 = vld [vmem:[%s5 + $0x18] sm:$0xff]
    %v1364 = vld [vmem:[%s5 + $0x20] sm:$0xff]
    %v1365 = vld [vmem:[%s5 + $0x28] sm:$0xff]
    %v1366 = vpack.c.bf16 %v1149, %v1149
    %1368 = vrot.lane.b32.xlu0 %v1366, 112
    %v1369 = vpop.permute.xlu0 %1368
    %v1373 = vunpack.c.l.b16 %v1363
    %v1374 = vunpack.c.h.b16 %v1363
    %v1375 = vunpack.c.l.b16 %v1364
    %v1376 = vunpack.c.h.b16 %v1364
    %v1377 = vunpack.c.l.b16 %v1365
    %v1378 = vunpack.c.h.b16 %v1365
    %v1379 = vpack.c.b16 %v1373, %v1373
    %v1380 = vpack.c.b16 %v1374, %v1374
    %v1381 = vpack.c.b16 %v1375, %v1375
    %v1382 = vpack.c.b16 %v1376, %v1376
    %v1383 = vpack.c.b16 %v1377, %v1377
    %v1384 = vpack.c.b16 %v1378, %v1378
    %v1386 = vsel %vm1180, %v1369, 0
    %v1389 = vsel %vm1184, %v1379, 0
    %v1392 = vsel %vm1184, %v1380, 0
    %v1395 = vsel %vm1184, %v1381, 0
    %v1398 = vsel %vm1184, %v1382, 0
    %v1401 = vsel %vm1184, %v1383, 0
    %v1404 = vsel %vm1184, %v1384, 0
    %1406 = vmatprep.subr.bf16.mxu0 %v1392
    %1407 = vmatpush1.bf16.msra.mxu0 %v1389
    %1408 = vmatprep.subr.bf16.mxu0 0
    %1409 = vmatpush1.bf16.msra.mxu0 0
    %1410 = vmatprep.subr.bf16.mxu0 0
    %1411 = vmatpush1.bf16.msra.mxu0 0
    %1412 = vmatprep.subr.bf16.mxu0 0
    %1413 = vmatpush1.bf16.msra.mxu0 0
    %1414 = vmatprep.subr.bf16.mxu0 0
    %1415 = vmatpush1.bf16.msra.mxu0 0
    %1416 = vmatprep.subr.bf16.mxu0 0
    %1417 = vmatpush1.bf16.msra.mxu0 0
    %1418 = vmatprep.subr.bf16.mxu0 0
    %1419 = vmatpush1.bf16.msra.mxu0 0
    %1420 = vmatprep.subr.bf16.mxu0 0
    %1421 = vmatpush1.bf16.msra.mxu0 0
    %1422 = vmatprep.subr.bf16.mxu0 0
    %1423 = vmatpush1.bf16.msra.mxu0 0
    %1424 = vmatprep.subr.bf16.mxu0 0
    %1425 = vmatpush1.bf16.msra.mxu0 0
    %1426 = vmatprep.subr.bf16.mxu0 0
    %1427 = vmatpush1.bf16.msra.mxu0 0
    %1428 = vmatprep.subr.bf16.mxu0 0
    %1429 = vmatpush1.bf16.msra.mxu0 0
    %1430 = vmatprep.subr.bf16.mxu0 0
    %1431 = vmatpush1.bf16.msra.mxu0 0
    %1432 = vmatprep.subr.bf16.mxu0 0
    %1433 = vmatpush1.bf16.msra.mxu0 0
    %1434 = vmatprep.subr.bf16.mxu0 0
    %1435 = vmatpush1.bf16.msra.mxu0 0
    %1436 = vmatprep.subr.bf16.mxu0 0
    %1437 = vmatpush1.bf16.msra.mxu0 0
    %1438 = vmatprep.mubr.bf16.mxu0 0
    %1439 = vmatmul.mubr.bf16.gmra.mrb[0].mxu0 %v1386
    %v1440 = vpop.f32.mrb[0].mxu0
    %v1441 = vadd.f32 0.0, %v1440
    %v1442 = vpop.f32.mrb[0].mxu0
    %v1443 = vadd.f32 0.0, %v1442
    %v1444 = vpop.f32.mrb[0].mxu0
    %v1445 = vpop.f32.mrb[0].mxu0
    %1446 = vdwg.mxu0
    %1447 = vmatprep.subr.bf16.mxu0 %v1398
    %1448 = vmatpush1.bf16.msra.mxu0 %v1395
    %1449 = vmatprep.subr.bf16.mxu0 0
    %1450 = vmatpush1.bf16.msra.mxu0 0
    %1451 = vmatprep.subr.bf16.mxu0 0
    %1452 = vmatpush1.bf16.msra.mxu0 0
    %1453 = vmatprep.subr.bf16.mxu0 0
    %1454 = vmatpush1.bf16.msra.mxu0 0
    %1455 = vmatprep.subr.bf16.mxu0 0
    %1456 = vmatpush1.bf16.msra.mxu0 0
    %1457 = vmatprep.subr.bf16.mxu0 0
    %1458 = vmatpush1.bf16.msra.mxu0 0
    %1459 = vmatprep.subr.bf16.mxu0 0
    %1460 = vmatpush1.bf16.msra.mxu0 0
    %1461 = vmatprep.subr.bf16.mxu0 0
    %1462 = vmatpush1.bf16.msra.mxu0 0
    %1463 = vmatprep.subr.bf16.mxu0 0
    %1464 = vmatpush1.bf16.msra.mxu0 0
    %1465 = vmatprep.subr.bf16.mxu0 0
    %1466 = vmatpush1.bf16.msra.mxu0 0
    %1467 = vmatprep.subr.bf16.mxu0 0
    %1468 = vmatpush1.bf16.msra.mxu0 0
    %1469 = vmatprep.subr.bf16.mxu0 0
    %1470 = vmatpush1.bf16.msra.mxu0 0
    %1471 = vmatprep.subr.bf16.mxu0 0
    %1472 = vmatpush1.bf16.msra.mxu0 0
    %1473 = vmatprep.subr.bf16.mxu0 0
    %1474 = vmatpush1.bf16.msra.mxu0 0
    %1475 = vmatprep.subr.bf16.mxu0 0
    %1476 = vmatpush1.bf16.msra.mxu0 0
    %1477 = vmatprep.subr.bf16.mxu0 0
    %1478 = vmatpush1.bf16.msra.mxu0 0
    %1479 = vmatprep.mubr.bf16.mxu0 0
    %1480 = vmatmul.mubr.bf16.gmra.mrb[0].mxu0 %v1386
    %v1481 = vpop.f32.mrb[0].mxu0
    %v1482 = vadd.f32 0.0, %v1481
    %v1483 = vpop.f32.mrb[0].mxu0
    %v1484 = vadd.f32 0.0, %v1483
    %v1485 = vpop.f32.mrb[0].mxu0
    %v1486 = vpop.f32.mrb[0].mxu0
    %1487 = vdwg.mxu0
    %1488 = vmatprep.subr.bf16.mxu0 %v1404
    %1489 = vmatpush1.bf16.msra.mxu0 %v1401
    %1490 = vmatprep.subr.bf16.mxu0 0
    %1491 = vmatpush1.bf16.msra.mxu0 0
    %1492 = vmatprep.subr.bf16.mxu0 0
    %1493 = vmatpush1.bf16.msra.mxu0 0
    %1494 = vmatprep.subr.bf16.mxu0 0
    %1495 = vmatpush1.bf16.msra.mxu0 0
    %1496 = vmatprep.subr.bf16.mxu0 0
    %1497 = vmatpush1.bf16.msra.mxu0 0
    %1498 = vmatprep.subr.bf16.mxu0 0
    %1499 = vmatpush1.bf16.msra.mxu0 0
    %1500 = vmatprep.subr.bf16.mxu0 0
    %1501 = vmatpush1.bf16.msra.mxu0 0
    %1502 = vmatprep.subr.bf16.mxu0 0
    %1503 = vmatpush1.bf16.msra.mxu0 0
    %1504 = vmatprep.subr.bf16.mxu0 0
    %1505 = vmatpush1.bf16.msra.mxu0 0
    %1506 = vmatprep.subr.bf16.mxu0 0
    %1507 = vmatpush1.bf16.msra.mxu0 0
    %1508 = vmatprep.subr.bf16.mxu0 0
    %1509 = vmatpush1.bf16.msra.mxu0 0
    %1510 = vmatprep.subr.bf16.mxu0 0
    %1511 = vmatpush1.bf16.msra.mxu0 0
    %1512 = vmatprep.subr.bf16.mxu0 0
    %1513 = vmatpush1.bf16.msra.mxu0 0
    %1514 = vmatprep.subr.bf16.mxu0 0
    %1515 = vmatpush1.bf16.msra.mxu0 0
    %1516 = vmatprep.subr.bf16.mxu0 0
    %1517 = vmatpush1.bf16.msra.mxu0 0
    %1518 = vmatprep.subr.bf16.mxu0 0
    %1519 = vmatpush1.bf16.msra.mxu0 0
    %1520 = vmatprep.mubr.bf16.mxu0 0
    %1521 = vmatmul.mubr.bf16.gmra.mrb[0].mxu0 %v1386
    %v1522 = vpop.f32.mrb[0].mxu0
    %v1523 = vadd.f32 0.0, %v1522
    %v1524 = vpop.f32.mrb[0].mxu0
    %v1525 = vadd.f32 0.0, %v1524
    %v1526 = vpop.f32.mrb[0].mxu0
    %v1527 = vpop.f32.mrb[0].mxu0
    %1528 = vdwg.mxu0
    %v1529 = vadd.f32 %v1357, %v1441
    %v1530 = vadd.f32 %v1358, %v1443
    %v1531 = vadd.f32 %v1359, %v1482
    %v1532 = vadd.f32 %v1360, %v1484
    %v1533 = vadd.f32 %v1361, %v1523
    %v1534 = vadd.f32 %v1362, %v1525
    %v1535 = vpack.c.bf16 %v1159, %v1159
    %v1536 = vld [vmem:[%s5 + $0x30] sm:$0xff]
    %v1537 = vld [vmem:[%s5 + $0x38] sm:$0xff]
    %v1538 = vld [vmem:[%s5 + $0x40] sm:$0xff]
    %v1539 = vld [vmem:[%s5 + $0x48] sm:$0xff]
    %v1540 = vld [vmem:[%s5 + $0x50] sm:$0xff]
    %v1541 = vld [vmem:[%s5 + $0x58] sm:$0xff]
    %v1542 = vld [vmem:[%s5 + $0x60] sm:$0xff]
    %v1543 = vld [vmem:[%s5 + $0x68] sm:$0xff]
    %v1544 = vld [vmem:[%s5 + $0x70] sm:$0xff]
    %v1545 = vld [vmem:[%s5 + $0x78] sm:$0xff]
    %v1546 = vld [vmem:[%s5 + $0x80] sm:$0xff]
    %v1547 = vld [vmem:[%s5 + $0x88] sm:$0xff]
    %1549 = vrot.lane.b32.xlu0 %v1535, 104
    %v1550 = vpop.permute.xlu0 %1549
    %v1563 = vunpack.c.l.b16 %v1536
    %v1564 = vunpack.c.h.b16 %v1536
    %v1565 = vunpack.c.l.b16 %v1537
    %v1566 = vunpack.c.h.b16 %v1537
    %v1567 = vunpack.c.l.b16 %v1538
    %v1568 = vunpack.c.h.b16 %v1538
    %v1569 = vunpack.c.l.b16 %v1539
    %v1570 = vunpack.c.h.b16 %v1539
    %v1571 = vunpack.c.l.b16 %v1540
    %v1572 = vunpack.c.h.b16 %v1540
    %v1573 = vunpack.c.l.b16 %v1541
    %v1574 = vunpack.c.h.b16 %v1541
    %v1575 = vunpack.c.l.b16 %v1542
    %v1576 = vunpack.c.h.b16 %v1542
    %v1577 = vunpack.c.l.b16 %v1543
    %v1578 = vunpack.c.h.b16 %v1543
    %v1579 = vunpack.c.l.b16 %v1544
    %v1580 = vunpack.c.h.b16 %v1544
    %v1581 = vunpack.c.l.b16 %v1545
    %v1582 = vunpack.c.h.b16 %v1545
    %v1583 = vunpack.c.l.b16 %v1546
    %v1584 = vunpack.c.h.b16 %v1546
    %v1585 = vunpack.c.l.b16 %v1547
    %v1586 = vunpack.c.h.b16 %v1547
    %v1587 = vpack.c.b16 %v1569, %v1563
    %v1588 = vpack.c.b16 %v1570, %v1564
    %v1589 = vpack.c.b16 %v1571, %v1565
    %v1590 = vpack.c.b16 %v1572, %v1566
    %v1591 = vpack.c.b16 %v1573, %v1567
    %v1592 = vpack.c.b16 %v1574, %v1568
    %v1593 = vpack.c.b16 %v1581, %v1575
    %v1594 = vpack.c.b16 %v1582, %v1576
    %v1595 = vpack.c.b16 %v1583, %v1577
    %v1596 = vpack.c.b16 %v1584, %v1578
    %v1597 = vpack.c.b16 %v1585, %v1579
    %v1598 = vpack.c.b16 %v1586, %v1580
    %vm1611 = vcmask 261120
    %v1613 = vsel %vm1611, %v1550, 0
    %1615 = vmatprep.subr.bf16.mxu0 %v1588
    %1616 = vmatpush1.bf16.msra.mxu0 %v1587
    %1617 = vmatprep.subr.bf16.mxu0 %v1594
    %1618 = vmatpush1.bf16.msra.mxu0 %v1593
    %1619 = vmatprep.subr.bf16.mxu0 0
    %1620 = vmatpush1.bf16.msra.mxu0 0
    %1621 = vmatprep.subr.bf16.mxu0 0
    %1622 = vmatpush1.bf16.msra.mxu0 0
    %1623 = vmatprep.subr.bf16.mxu0 0
    %1624 = vmatpush1.bf16.msra.mxu0 0
    %1625 = vmatprep.subr.bf16.mxu0 0
    %1626 = vmatpush1.bf16.msra.mxu0 0
    %1627 = vmatprep.subr.bf16.mxu0 0
    %1628 = vmatpush1.bf16.msra.mxu0 0
    %1629 = vmatprep.subr.bf16.mxu0 0
    %1630 = vmatpush1.bf16.msra.mxu0 0
    %1631 = vmatprep.subr.bf16.mxu0 0
    %1632 = vmatpush1.bf16.msra.mxu0 0
    %1633 = vmatprep.subr.bf16.mxu0 0
    %1634 = vmatpush1.bf16.msra.mxu0 0
    %1635 = vmatprep.subr.bf16.mxu0 0
    %1636 = vmatpush1.bf16.msra.mxu0 0
    %1637 = vmatprep.subr.bf16.mxu0 0
    %1638 = vmatpush1.bf16.msra.mxu0 0
    %1639 = vmatprep.subr.bf16.mxu0 0
    %1640 = vmatpush1.bf16.msra.mxu0 0
    %1641 = vmatprep.subr.bf16.mxu0 0
    %1642 = vmatpush1.bf16.msra.mxu0 0
    %1643 = vmatprep.subr.bf16.mxu0 0
    %1644 = vmatpush1.bf16.msra.mxu0 0
    %1645 = vmatprep.subr.bf16.mxu0 0
    %1646 = vmatpush1.bf16.msra.mxu0 0
    %1647 = vmatprep.mubr.bf16.mxu0 0
    %1648 = vmatmul.mubr.bf16.gmra.mrb[0].mxu0 %v1613
    %v1649 = vpop.f32.mrb[0].mxu0
    %v1650 = vadd.f32 0.0, %v1649
    %v1651 = vpop.f32.mrb[0].mxu0
    %v1652 = vadd.f32 0.0, %v1651
    %v1653 = vpop.f32.mrb[0].mxu0
    %v1654 = vpop.f32.mrb[0].mxu0
    %1655 = vdwg.mxu0
    %1656 = vmatprep.subr.bf16.mxu0 %v1590
    %1657 = vmatpush1.bf16.msra.mxu0 %v1589
    %1658 = vmatprep.subr.bf16.mxu0 %v1596
    %1659 = vmatpush1.bf16.msra.mxu0 %v1595
    %1660 = vmatprep.subr.bf16.mxu0 0
    %1661 = vmatpush1.bf16.msra.mxu0 0
    %1662 = vmatprep.subr.bf16.mxu0 0
    %1663 = vmatpush1.bf16.msra.mxu0 0
    %1664 = vmatprep.subr.bf16.mxu0 0
    %1665 = vmatpush1.bf16.msra.mxu0 0
    %1666 = vmatprep.subr.bf16.mxu0 0
    %1667 = vmatpush1.bf16.msra.mxu0 0
    %1668 = vmatprep.subr.bf16.mxu0 0
    %1669 = vmatpush1.bf16.msra.mxu0 0
    %1670 = vmatprep.subr.bf16.mxu0 0
    %1671 = vmatpush1.bf16.msra.mxu0 0
    %1672 = vmatprep.subr.bf16.mxu0 0
    %1673 = vmatpush1.bf16.msra.mxu0 0
    %1674 = vmatprep.subr.bf16.mxu0 0
    %1675 = vmatpush1.bf16.msra.mxu0 0
    %1676 = vmatprep.subr.bf16.mxu0 0
    %1677 = vmatpush1.bf16.msra.mxu0 0
    %1678 = vmatprep.subr.bf16.mxu0 0
    %1679 = vmatpush1.bf16.msra.mxu0 0
    %1680 = vmatprep.subr.bf16.mxu0 0
    %1681 = vmatpush1.bf16.msra.mxu0 0
    %1682 = vmatprep.subr.bf16.mxu0 0
    %1683 = vmatpush1.bf16.msra.mxu0 0
    %1684 = vmatprep.subr.bf16.mxu0 0
    %1685 = vmatpush1.bf16.msra.mxu0 0
    %1686 = vmatprep.subr.bf16.mxu0 0
    %1687 = vmatpush1.bf16.msra.mxu0 0
    %1688 = vmatprep.mubr.bf16.mxu0 0
    %1689 = vmatmul.mubr.bf16.gmra.mrb[0].mxu0 %v1613
    %v1690 = vpop.f32.mrb[0].mxu0
    %v1691 = vadd.f32 0.0, %v1690
    %v1692 = vpop.f32.mrb[0].mxu0
    %v1693 = vadd.f32 0.0, %v1692
    %v1694 = vpop.f32.mrb[0].mxu0
    %v1695 = vpop.f32.mrb[0].mxu0
    %1696 = vdwg.mxu0
    %1697 = vmatprep.subr.bf16.mxu0 %v1592
    %1698 = vmatpush1.bf16.msra.mxu0 %v1591
    %1699 = vmatprep.subr.bf16.mxu0 %v1598
    %1700 = vmatpush1.bf16.msra.mxu0 %v1597
    %1701 = vmatprep.subr.bf16.mxu0 0
    %1702 = vmatpush1.bf16.msra.mxu0 0
    %1703 = vmatprep.subr.bf16.mxu0 0
    %1704 = vmatpush1.bf16.msra.mxu0 0
    %1705 = vmatprep.subr.bf16.mxu0 0
    %1706 = vmatpush1.bf16.msra.mxu0 0
    %1707 = vmatprep.subr.bf16.mxu0 0
    %1708 = vmatpush1.bf16.msra.mxu0 0
    %1709 = vmatprep.subr.bf16.mxu0 0
    %1710 = vmatpush1.bf16.msra.mxu0 0
    %1711 = vmatprep.subr.bf16.mxu0 0
    %1712 = vmatpush1.bf16.msra.mxu0 0
    %1713 = vmatprep.subr.bf16.mxu0 0
    %1714 = vmatpush1.bf16.msra.mxu0 0
    %1715 = vmatprep.subr.bf16.mxu0 0
    %1716 = vmatpush1.bf16.msra.mxu0 0
    %1717 = vmatprep.subr.bf16.mxu0 0
    %1718 = vmatpush1.bf16.msra.mxu0 0
    %1719 = vmatprep.subr.bf16.mxu0 0
    %1720 = vmatpush1.bf16.msra.mxu0 0
    %1721 = vmatprep.subr.bf16.mxu0 0
    %1722 = vmatpush1.bf16.msra.mxu0 0
    %1723 = vmatprep.subr.bf16.mxu0 0
    %1724 = vmatpush1.bf16.msra.mxu0 0
    %1725 = vmatprep.subr.bf16.mxu0 0
    %1726 = vmatpush1.bf16.msra.mxu0 0
    %1727 = vmatprep.subr.bf16.mxu0 0
    %1728 = vmatpush1.bf16.msra.mxu0 0
    %1729 = vmatprep.mubr.bf16.mxu0 0
    %1730 = vmatmul.mubr.bf16.gmra.mrb[0].mxu0 %v1613
    %v1731 = vpop.f32.mrb[0].mxu0
    %v1732 = vadd.f32 0.0, %v1731
    %v1733 = vpop.f32.mrb[0].mxu0
    %v1734 = vadd.f32 0.0, %v1733
    %v1735 = vpop.f32.mrb[0].mxu0
    %v1736 = vpop.f32.mrb[0].mxu0
    %1737 = vdwg.mxu0
    %v1738 = vadd.f32 %v1529, %v1650
    %v1739 = vadd.f32 %v1530, %v1652
    %v1740 = vadd.f32 %v1531, %v1691
    %v1741 = vadd.f32 %v1532, %v1693
    %v1742 = vadd.f32 %v1533, %v1732
    %v1743 = vadd.f32 %v1534, %v1734
    %v1750 = vcombine.low %v1738, %v1739
    %v1751 = vcombine.low %v1740, %v1741
    %v1753 = vunpack.c.l.s4 1983009808
    %v1754 = vunpack.c.0.s8 %v1753
    %v1755 = vlaneseq
    %v1756 = vshrl.u32 %v1755, 7
    %v1757 = vsub.s32 %v1754, %v1756
    %v1758 = vrot.slane %v1750, %v1757
    %v1760 = vunpack.c.l.s4 1983009808
    %v1761 = vunpack.c.0.s8 %v1760
    %v1762 = vlaneseq
    %v1763 = vshrl.u32 %v1762, 7
    %v1764 = vsub.s32 %v1761, %v1763
    %v1765 = vrot.slane %v1751, %v1764
    %v1766 = vcombine.low %v1758, %v1765
    %v1767 = vcombine.low %v1742, %v1743
    %v1769 = vunpack.c.l.s4 1983009808
    %v1770 = vunpack.c.0.s8 %v1769
    %v1771 = vlaneseq
    %v1772 = vshrl.u32 %v1771, 7
    %v1773 = vsub.s32 %v1770, %v1772
    %v1774 = vrot.slane %v1767, %v1773
    %1777 = vst [vmem:[#allocation2] sm:$0xff] %v1766
    %1778 = vst [vmem:[#allocation2 + $0x8] sm:$0xf] %v1774
    // Predicated region
    $region30: #{tpu_custom_call.1} parent=1 // pred_check
      _
    $region31: #{tpu_custom_call.1} parent=1 // pred_check_branch
      %1780 = sbr.rel (0) target = $region33
    $region32: #{tpu_custom_call.1} parent=1 // pred_region
      %s1782 = ssub.s32 192, 192
      %1783 = vsyncadd [#allocation3], %s1782
      %s1785 = sshll.u32 [#allocation2], 4
      %s1786 = int_to_ptr.vmem [resolvable:$true] %s1785
      %1788 = dma.vmem_to_hbm [thread:$0]  %s1786, 192, %s7, [#allocation3]
    $region33: #{tpu_custom_call.1} parent=1 // pred_fallthru
      _
    // Predicated region
    $region34: #{tpu_custom_call.1} parent=1 // pred_check
      _
    $region35: #{tpu_custom_call.1} parent=1 // pred_check_branch
      %1790 = sbr.rel (0) target = $region37
    $region36: #{tpu_custom_call.1} parent=1 // pred_region
      %1791 = dma.done [#allocation3], 192
    $region37: #{tpu_custom_call.1} parent=1 // pred_fallthru
      _
    %1792 = vsyncpa [#allocation3], 1

</llo_original>
